<compile_context>
chip_gen: v6e
topology: v6e:2x2x1
jax: 0.10.0
libtpu: 0.0.40
codegen_flags: <defaults>
</compile_context>

<pallas_src>
import functools

import jax
import jax.numpy as jnp
from jax import lax
from jax.experimental import pallas as pl
from jax.experimental.pallas import tpu as pltpu


def _pfn_kernel(cin, vox_ref, wt_ref, bias_ref, out_ref, vox_t_ref):
    # vox_ref  : (TP, NPTS*CIN) bf16  pillar-major block, contiguous in HBM.
    # wt_ref   : (C, CIN)       bf16  BN-scale-folded, pre-transposed weight.
    # bias_ref : (C, 1)         f32   folded BN bias (column -> lane broadcast).
    # out_ref  : (C, TP)        f32   pooled pillar features (lane-dense store).
    # vox_t_ref: (NPTS*CIN, TP) bf16  VMEM scratch for the in-kernel transpose.
    c, tp = out_ref.shape
    f = vox_ref.shape[1]
    npts = f // cin

    # One XLU pass: pillar-major -> point/channel-major, so every per-point slab
    # below is a clean lane-dense (CIN, TP) sublane slice (no narrow lane loads).
    vox_t_ref[...] = vox_ref[...].T

    wt = wt_ref[...]                                    # (C, CIN) bf16

    def body(n, acc):
        start = n * cin
        if cin % 8 == 0:                                # static check: aligned ds
            start = pl.multiple_of(start, 8)
        x = vox_t_ref[pl.ds(start, cin), :]             # (CIN, TP) bf16
        # MXU: (C, CIN) @ (CIN, TP) -> (C, TP), f32 accumulation.
        y = jnp.dot(wt, x, preferred_element_type=jnp.float32)
        return jnp.maximum(acc, y)                      # single VPU op per iter

    # Bias + ReLU are point-invariant and hoisted below the loop, so the
    # accumulator MUST start at -inf-like (finfo.min), not zero.
    acc0 = jnp.full((c, tp), jnp.finfo(jnp.float32).min, dtype=jnp.float32)
    acc = lax.fori_loop(0, npts, body, acc0, unroll=True)

    bias = bias_ref[...].astype(jnp.float32)            # (C, 1), broadcast once
    out_ref[...] = jnp.maximum(acc + bias, 0.0).astype(out_ref.dtype)


def _pick_tile_pillars(num_pillars):
    """Tile size for the pillar axis.

    Capped at 512 so the loop-carried (C, TP) f32 accumulator stays <=16 vregs
    (no spill pressure), and we prefer >=4 grid steps so on v7x each of the two
    TensorCores gets >=2 steps and keeps prefetch/writeback overlap.
    """
    if num_pillars % 128 != 0:
        return num_pillars                     # single full-extent block fallback
    for min_steps in (4, 2, 1):
        for cand in (512, 256, 128):
            if num_pillars % cand == 0 and num_pillars // cand >= min_steps:
                return cand
    return num_pillars


def pfn_forward(vox_flat, wt_folded, bias_col, *, npts, cin, tile_pillars=None):
    """part1 (PFN): per-point Linear (BN folded) + ReLU + max over points.

    vox_flat : (P, NPTS*CIN) bf16/f32  pillar-major, free reshape of (P,NPTS,CIN)
    wt_folded: (C, CIN)                (w * bn_scale).T
    bias_col : (C, 1)        f32       folded BN bias
    returns  : (C, P)        f32       channel-major pillar features
    """
    num_pillars, feat = vox_flat.shape
    assert feat == npts * cin
    out_ch = wt_folded.shape[0]

    if tile_pillars is None:
        tile_pillars = _pick_tile_pillars(num_pillars)
    assert num_pillars % tile_pillars == 0

    grid_spec = pltpu.PrefetchScalarGridSpec(
        num_scalar_prefetch=0,
        grid=(num_pillars // tile_pillars,),
        in_specs=[
            # Contiguous HBM block; no host-side relayout of the voxel tensor.
            pl.BlockSpec((tile_pillars, feat), lambda i: (i, 0)),
            pl.BlockSpec((out_ch, cin), lambda i: (0, 0)),
            pl.BlockSpec((out_ch, 1), lambda i: (0, 0)),
        ],
        # Lane-dense output: (C, TP) with TP a multiple of 128 -> unmasked stores.
        out_specs=pl.BlockSpec((out_ch, tile_pillars), lambda i: (0, i)),
        scratch_shapes=[pltpu.VMEM((feat, tile_pillars), vox_flat.dtype)],
    )
    return pl.pallas_call(
        functools.partial(_pfn_kernel, cin),
        out_shape=jax.ShapeDtypeStruct((out_ch, num_pillars), jnp.float32),
        grid_spec=grid_spec,
        compiler_params=pltpu.CompilerParams(
            dimension_semantics=("parallel",),
        ),
    )(vox_flat, wt_folded, bias_col)


def map_to_bev(pillar_features_cp, coords, batch_size, H, W, *, channels_last=False):
    """PointPillarScatter with contiguous per-pillar NHWC writes.

    pillar_features_cp: (C, P) channel-major (kernel output).
    coords: (P, 4) int32 = (batch_idx, z, y, x); assumed valid & collision-free.
    """
    C, P = pillar_features_cp.shape
    b = coords[:, 0]
    flat = coords[:, 2] * W + coords[:, 3]
    # NHWC canvas: one contiguous C-vector write per pillar (vs. C element-strided
    # 4-byte writes per pillar for a direct NCHW scatter).
    canvas = jnp.zeros((batch_size, H * W, C), dtype=pillar_features_cp.dtype)
    canvas = canvas.at[b, flat].set(pillar_features_cp.T)
    canvas = canvas.reshape(batch_size, H, W, C)
    if channels_last:
        return canvas
    # One well-formed transpose pass to NCHW for API fidelity with PyTorch;
    # keep NHWC (channels_last=True) if the downstream TPU conv backbone allows.
    return canvas.transpose(0, 3, 1, 2)


def quant_model_forward(voxels, coords, params, batch_size, H, W,
                        *, compute_dtype=jnp.bfloat16):
    """QuantModel.forward with part2=None: returns spatial_features [B, C, H, W]."""
    P, NPTS, CIN = voxels.shape
    # Fold eval-mode BN scale into the weight ((x@w)*s == x@(w*s)); pre-transpose.
    wt_folded = (params["w"] * params["bn_scale"]).T                 # (C, CIN)
    bias_col = params["bn_bias"].reshape(-1, 1).astype(jnp.float32)  # (C, 1)

    # Free reshape (no relayout) + cast of the dominant HBM stream to bf16.
    # TODO(synk): ideally the upstream voxelizer emits (P, NPTS*CIN) bf16 directly
    # so even this cast pass disappears from the pipeline.
    vox_flat = voxels.reshape(P, NPTS * CIN).astype(compute_dtype)
    wt_c = wt_folded.astype(compute_dtype)

    pillar_features_cp = pfn_forward(vox_flat, wt_c, bias_col,
                                     npts=NPTS, cin=CIN)             # (C, P)
    return map_to_bev(pillar_features_cp, coords, batch_size, H, W)


def _reference_forward_f32(voxels, coords, params, batch_size, H, W):
    # Pure-JAX reference in the original (f32, unfolded, relu-then-max) form.
    y = jnp.einsum("pnc,cd->pnd", voxels.astype(jnp.float32),
                   params["w"].astype(jnp.float32),
                   precision=lax.Precision.HIGHEST)
    y = y * params["bn_scale"][None, :, :] + params["bn_bias"][None, :, :]
    y = jnp.maximum(y, 0.0)
    pf = jnp.max(y, axis=1)                                           # (P, C)
    b = coords[:, 0]
    flat = coords[:, 2] * W + coords[:, 3]
    canvas = jnp.zeros((batch_size, H * W, pf.shape[1]), dtype=pf.dtype)
    canvas = canvas.at[b, flat].set(pf)
    return canvas.reshape(batch_size, H, W, -1).transpose(0, 3, 1, 2)


def _reference_forward_quantized(voxels, coords, params, batch_size, H, W, dtype):
    # Mirrors the kernel's numerics (folded weight, bf16-quantized inputs,
    # f32 accumulation, hoisted bias/ReLU which is mathematically identical).
    wt = (params["w"] * params["bn_scale"]).T.astype(dtype).astype(jnp.float32)
    bias = params["bn_bias"].reshape(1, -1).astype(jnp.float32)
    x = voxels.astype(dtype).astype(jnp.float32)
    y = jnp.einsum("pnc,dc->pnd", x, wt, precision=lax.Precision.HIGHEST)
    pf = jnp.maximum(jnp.max(y, axis=1) + bias, 0.0)                  # (P, C)
    return map_to_bev(pf.T, coords, batch_size, H, W)


if __name__ == "__main__":
    # Small, deterministic shapes (4 grid steps of 128 pillars each).
    B, H, W = 2, 16, 16        # BEV grid
    P = 512                    # non-empty pillars (multiple of 128)
    NPTS = 16                  # points per pillar
    CIN = 8                    # raw point-feature channels
    C = 32                     # pillar feature channels

    key = jax.random.PRNGKey(0)
    k_vox, k_w, _, _ = jax.random.split(key, 4)

    voxels = jax.random.normal(k_vox, (P, NPTS, CIN), dtype=jnp.float32)

    # Deterministic parameters (Linear bias=False; BatchNorm1d in eval mode folded
    # into per-channel scale/bias: scale = gamma/sqrt(var+eps), bias = beta - mean*scale).
    w = jax.random.normal(k_w, (CIN, C), dtype=jnp.float32) * 0.1
    gamma = 1.0 + 0.01 * jnp.arange(C, dtype=jnp.float32)
    beta = 0.02 * jnp.arange(C, dtype=jnp.float32)
    running_mean = jnp.zeros((C,), dtype=jnp.float32)
    running_var = jnp.ones((C,), dtype=jnp.float32)
    eps = 1e-3
    bn_scale = (gamma / jnp.sqrt(running_var + eps)).reshape(1, C)
    bn_bias = (beta - running_mean * bn_scale[0]).reshape(1, C)
    params = {"w": w, "bn_scale": bn_scale, "bn_bias": bn_bias}

    # Deterministic, collision-free pillar coords: (batch_idx, z, y, x).
    idx = jnp.arange(P, dtype=jnp.int32)
    b_idx = idx % B
    cell = idx // B
    coords = jnp.stack(
        [b_idx, jnp.zeros_like(idx), cell // W, cell % W], axis=1)

    fwd = jax.jit(quant_model_forward, static_argnames=("batch_size", "H", "W"))
    spatial_features = fwd(voxels, coords, params, batch_size=B, H=H, W=W)
    spatial_features = jax.block_until_ready(spatial_features)

    assert spatial_features.shape == (B, C, H, W)

    # Tight check against a reference with identical bf16-quantized inputs.
    ref_q = _reference_forward_quantized(voxels, coords, params, B, H, W,
                                         jnp.bfloat16)
    assert jnp.allclose(spatial_features, ref_q, atol=1e-4, rtol=1e-4)

    # Loose check against the original f32 semantics (bf16 ingest error only).
    ref_f32 = _reference_forward_f32(voxels, coords, params, B, H, W)
    assert jnp.allclose(spatial_features, ref_f32, atol=5e-2, rtol=5e-2)

    print("KERNEL_OK")
</pallas_src>

<mosaic_0001>
module attributes {stable_mosaic.version = 11 : i64} {
  func.func @_pfn_kernel(%arg0: i32, %arg1: memref<128x128xbf16, #tpu.memory_space<vmem>>, %arg2: memref<32x8xbf16, #tpu.memory_space<vmem>>, %arg3: memref<32x1xf32, #tpu.memory_space<vmem>>, %arg4: memref<32x128xf32, #tpu.memory_space<vmem>>, %arg5: memref<128x128xbf16, #tpu.memory_space<vmem>>) attributes {dimension_semantics = [#tpu.dimension_semantics<parallel>], iteration_bounds = array<i64: 4>, scalar_prefetch = 0 : i64, scratch_operands = 1 : i64, tpu.core_type = #tpu.core_type<tc>, window_params = [{transform_indices = @transform_0, window_bounds = array<i64: 128, 128>}, {pipeline_mode = #tpu.pipeline_mode<synchronous>, transform_indices = @transform_1, window_bounds = array<i64: 32, 8>}, {pipeline_mode = #tpu.pipeline_mode<synchronous>, transform_indices = @transform_2, window_bounds = array<i64: 32, 1>}, {transform_indices = @transform_3, window_bounds = array<i64: 32, 128>}]} {
    %c0 = arith.constant 0 : index
    %c0_0 = arith.constant 0 : index
    %0 = vector.load %arg1[%c0, %c0_0] : memref<128x128xbf16, #tpu.memory_space<vmem>>, vector<128x128xbf16>
    %1 = tpu.transpose %0, [1, 0] : vector<128x128xbf16> -> vector<128x128xbf16>
    %c0_1 = arith.constant 0 : index
    %c0_2 = arith.constant 0 : index
    %2 = vector.load %arg5[%c0_1, %c0_2] : memref<128x128xbf16, #tpu.memory_space<vmem>>, vector<128x128xbf16>
    tpu.vector_store %arg5[%c0_1, %c0_2], %1 {strides = array<i32>} : memref<128x128xbf16, #tpu.memory_space<vmem>>, vector<128x128xbf16>,
    %c0_3 = arith.constant 0 : index
    %c0_4 = arith.constant 0 : index
    %3 = vector.load %arg2[%c0_3, %c0_4] : memref<32x8xbf16, #tpu.memory_space<vmem>>, vector<32x8xbf16>
    %cst = arith.constant -3.40282347E+38 : f32
    %4 = vector.broadcast %cst : f32 to vector<32x128xf32>
    %c0_i32 = arith.constant 0 : i32
    %c8_i32 = arith.constant 8 : i32
    %5 = arith.muli %c0_i32, %c8_i32 : i32
    %6 = tpu.assume_multiple %5, 8 : i32
    %7 = arith.index_cast %6 : i32 to index
    %c0_5 = arith.constant 0 : index
    %8 = vector.load %arg5[%7, %c0_5] : memref<128x128xbf16, #tpu.memory_space<vmem>>, vector<8x128xbf16>
    %cst_6 = arith.constant dense<0.000000e+00> : vector<32x128xf32>
    %9 = tpu.matmul %3, %8, %cst_6 {dimension_numbers = #tpu.dot_dimension_numbers<[1], [0], [0], [1], [0, 0, 1, 1], [], []>} : vector<32x8xbf16>, vector<8x128xbf16>, vector<32x128xf32> -> vector<32x128xf32>
    %10 = arith.maximumf %4, %9 : vector<32x128xf32>
    %c1_i32 = arith.constant 1 : i32
    %c8_i32_7 = arith.constant 8 : i32
    %11 = arith.muli %c1_i32, %c8_i32_7 : i32
    %12 = tpu.assume_multiple %11, 8 : i32
    %13 = arith.index_cast %12 : i32 to index
    %c0_8 = arith.constant 0 : index
    %14 = vector.load %arg5[%13, %c0_8] : memref<128x128xbf16, #tpu.memory_space<vmem>>, vector<8x128xbf16>
    %cst_9 = arith.constant dense<0.000000e+00> : vector<32x128xf32>
    %15 = tpu.matmul %3, %14, %cst_9 {dimension_numbers = #tpu.dot_dimension_numbers<[1], [0], [0], [1], [0, 0, 1, 1], [], []>} : vector<32x8xbf16>, vector<8x128xbf16>, vector<32x128xf32> -> vector<32x128xf32>
    %16 = arith.maximumf %10, %15 : vector<32x128xf32>
    %c2_i32 = arith.constant 2 : i32
    %c8_i32_10 = arith.constant 8 : i32
    %17 = arith.muli %c2_i32, %c8_i32_10 : i32
    %18 = tpu.assume_multiple %17, 8 : i32
    %19 = arith.index_cast %18 : i32 to index
    %c0_11 = arith.constant 0 : index
    %20 = vector.load %arg5[%19, %c0_11] : memref<128x128xbf16, #tpu.memory_space<vmem>>, vector<8x128xbf16>
    %cst_12 = arith.constant dense<0.000000e+00> : vector<32x128xf32>
    %21 = tpu.matmul %3, %20, %cst_12 {dimension_numbers = #tpu.dot_dimension_numbers<[1], [0], [0], [1], [0, 0, 1, 1], [], []>} : vector<32x8xbf16>, vector<8x128xbf16>, vector<32x128xf32> -> vector<32x128xf32>
    %22 = arith.maximumf %16, %21 : vector<32x128xf32>
    %c3_i32 = arith.constant 3 : i32
    %c8_i32_13 = arith.constant 8 : i32
    %23 = arith.muli %c3_i32, %c8_i32_13 : i32
    %24 = tpu.assume_multiple %23, 8 : i32
    %25 = arith.index_cast %24 : i32 to index
    %c0_14 = arith.constant 0 : index
    %26 = vector.load %arg5[%25, %c0_14] : memref<128x128xbf16, #tpu.memory_space<vmem>>, vector<8x128xbf16>
    %cst_15 = arith.constant dense<0.000000e+00> : vector<32x128xf32>
    %27 = tpu.matmul %3, %26, %cst_15 {dimension_numbers = #tpu.dot_dimension_numbers<[1], [0], [0], [1], [0, 0, 1, 1], [], []>} : vector<32x8xbf16>, vector<8x128xbf16>, vector<32x128xf32> -> vector<32x128xf32>
    %28 = arith.maximumf %22, %27 : vector<32x128xf32>
    %c4_i32 = arith.constant 4 : i32
    %c8_i32_16 = arith.constant 8 : i32
    %29 = arith.muli %c4_i32, %c8_i32_16 : i32
    %30 = tpu.assume_multiple %29, 8 : i32
    %31 = arith.index_cast %30 : i32 to index
    %c0_17 = arith.constant 0 : index
    %32 = vector.load %arg5[%31, %c0_17] : memref<128x128xbf16, #tpu.memory_space<vmem>>, vector<8x128xbf16>
    %cst_18 = arith.constant dense<0.000000e+00> : vector<32x128xf32>
    %33 = tpu.matmul %3, %32, %cst_18 {dimension_numbers = #tpu.dot_dimension_numbers<[1], [0], [0], [1], [0, 0, 1, 1], [], []>} : vector<32x8xbf16>, vector<8x128xbf16>, vector<32x128xf32> -> vector<32x128xf32>
    %34 = arith.maximumf %28, %33 : vector<32x128xf32>
    %c5_i32 = arith.constant 5 : i32
    %c8_i32_19 = arith.constant 8 : i32
    %35 = arith.muli %c5_i32, %c8_i32_19 : i32
    %36 = tpu.assume_multiple %35, 8 : i32
    %37 = arith.index_cast %36 : i32 to index
    %c0_20 = arith.constant 0 : index
    %38 = vector.load %arg5[%37, %c0_20] : memref<128x128xbf16, #tpu.memory_space<vmem>>, vector<8x128xbf16>
    %cst_21 = arith.constant dense<0.000000e+00> : vector<32x128xf32>
    %39 = tpu.matmul %3, %38, %cst_21 {dimension_numbers = #tpu.dot_dimension_numbers<[1], [0], [0], [1], [0, 0, 1, 1], [], []>} : vector<32x8xbf16>, vector<8x128xbf16>, vector<32x128xf32> -> vector<32x128xf32>
    %40 = arith.maximumf %34, %39 : vector<32x128xf32>
    %c6_i32 = arith.constant 6 : i32
    %c8_i32_22 = arith.constant 8 : i32
    %41 = arith.muli %c6_i32, %c8_i32_22 : i32
    %42 = tpu.assume_multiple %41, 8 : i32
    %43 = arith.index_cast %42 : i32 to index
    %c0_23 = arith.constant 0 : index
    %44 = vector.load %arg5[%43, %c0_23] : memref<128x128xbf16, #tpu.memory_space<vmem>>, vector<8x128xbf16>
    %cst_24 = arith.constant dense<0.000000e+00> : vector<32x128xf32>
    %45 = tpu.matmul %3, %44, %cst_24 {dimension_numbers = #tpu.dot_dimension_numbers<[1], [0], [0], [1], [0, 0, 1, 1], [], []>} : vector<32x8xbf16>, vector<8x128xbf16>, vector<32x128xf32> -> vector<32x128xf32>
    %46 = arith.maximumf %40, %45 : vector<32x128xf32>
    %c7_i32 = arith.constant 7 : i32
    %c8_i32_25 = arith.constant 8 : i32
    %47 = arith.muli %c7_i32, %c8_i32_25 : i32
    %48 = tpu.assume_multiple %47, 8 : i32
    %49 = arith.index_cast %48 : i32 to index
    %c0_26 = arith.constant 0 : index
    %50 = vector.load %arg5[%49, %c0_26] : memref<128x128xbf16, #tpu.memory_space<vmem>>, vector<8x128xbf16>
    %cst_27 = arith.constant dense<0.000000e+00> : vector<32x128xf32>
    %51 = tpu.matmul %3, %50, %cst_27 {dimension_numbers = #tpu.dot_dimension_numbers<[1], [0], [0], [1], [0, 0, 1, 1], [], []>} : vector<32x8xbf16>, vector<8x128xbf16>, vector<32x128xf32> -> vector<32x128xf32>
    %52 = arith.maximumf %46, %51 : vector<32x128xf32>
    %c8_i32_28 = arith.constant 8 : i32
    %c8_i32_29 = arith.constant 8 : i32
    %53 = arith.muli %c8_i32_28, %c8_i32_29 : i32
    %54 = tpu.assume_multiple %53, 8 : i32
    %55 = arith.index_cast %54 : i32 to index
    %c0_30 = arith.constant 0 : index
    %56 = vector.load %arg5[%55, %c0_30] : memref<128x128xbf16, #tpu.memory_space<vmem>>, vector<8x128xbf16>
    %cst_31 = arith.constant dense<0.000000e+00> : vector<32x128xf32>
    %57 = tpu.matmul %3, %56, %cst_31 {dimension_numbers = #tpu.dot_dimension_numbers<[1], [0], [0], [1], [0, 0, 1, 1], [], []>} : vector<32x8xbf16>, vector<8x128xbf16>, vector<32x128xf32> -> vector<32x128xf32>
    %58 = arith.maximumf %52, %57 : vector<32x128xf32>
    %c9_i32 = arith.constant 9 : i32
    %c8_i32_32 = arith.constant 8 : i32
    %59 = arith.muli %c9_i32, %c8_i32_32 : i32
    %60 = tpu.assume_multiple %59, 8 : i32
    %61 = arith.index_cast %60 : i32 to index
    %c0_33 = arith.constant 0 : index
    %62 = vector.load %arg5[%61, %c0_33] : memref<128x128xbf16, #tpu.memory_space<vmem>>, vector<8x128xbf16>
    %cst_34 = arith.constant dense<0.000000e+00> : vector<32x128xf32>
    %63 = tpu.matmul %3, %62, %cst_34 {dimension_numbers = #tpu.dot_dimension_numbers<[1], [0], [0], [1], [0, 0, 1, 1], [], []>} : vector<32x8xbf16>, vector<8x128xbf16>, vector<32x128xf32> -> vector<32x128xf32>
    %64 = arith.maximumf %58, %63 : vector<32x128xf32>
    %c10_i32 = arith.constant 10 : i32
    %c8_i32_35 = arith.constant 8 : i32
    %65 = arith.muli %c10_i32, %c8_i32_35 : i32
    %66 = tpu.assume_multiple %65, 8 : i32
    %67 = arith.index_cast %66 : i32 to index
    %c0_36 = arith.constant 0 : index
    %68 = vector.load %arg5[%67, %c0_36] : memref<128x128xbf16, #tpu.memory_space<vmem>>, vector<8x128xbf16>
    %cst_37 = arith.constant dense<0.000000e+00> : vector<32x128xf32>
    %69 = tpu.matmul %3, %68, %cst_37 {dimension_numbers = #tpu.dot_dimension_numbers<[1], [0], [0], [1], [0, 0, 1, 1], [], []>} : vector<32x8xbf16>, vector<8x128xbf16>, vector<32x128xf32> -> vector<32x128xf32>
    %70 = arith.maximumf %64, %69 : vector<32x128xf32>
    %c11_i32 = arith.constant 11 : i32
    %c8_i32_38 = arith.constant 8 : i32
    %71 = arith.muli %c11_i32, %c8_i32_38 : i32
    %72 = tpu.assume_multiple %71, 8 : i32
    %73 = arith.index_cast %72 : i32 to index
    %c0_39 = arith.constant 0 : index
    %74 = vector.load %arg5[%73, %c0_39] : memref<128x128xbf16, #tpu.memory_space<vmem>>, vector<8x128xbf16>
    %cst_40 = arith.constant dense<0.000000e+00> : vector<32x128xf32>
    %75 = tpu.matmul %3, %74, %cst_40 {dimension_numbers = #tpu.dot_dimension_numbers<[1], [0], [0], [1], [0, 0, 1, 1], [], []>} : vector<32x8xbf16>, vector<8x128xbf16>, vector<32x128xf32> -> vector<32x128xf32>
    %76 = arith.maximumf %70, %75 : vector<32x128xf32>
    %c12_i32 = arith.constant 12 : i32
    %c8_i32_41 = arith.constant 8 : i32
    %77 = arith.muli %c12_i32, %c8_i32_41 : i32
    %78 = tpu.assume_multiple %77, 8 : i32
    %79 = arith.index_cast %78 : i32 to index
    %c0_42 = arith.constant 0 : index
    %80 = vector.load %arg5[%79, %c0_42] : memref<128x128xbf16, #tpu.memory_space<vmem>>, vector<8x128xbf16>
    %cst_43 = arith.constant dense<0.000000e+00> : vector<32x128xf32>
    %81 = tpu.matmul %3, %80, %cst_43 {dimension_numbers = #tpu.dot_dimension_numbers<[1], [0], [0], [1], [0, 0, 1, 1], [], []>} : vector<32x8xbf16>, vector<8x128xbf16>, vector<32x128xf32> -> vector<32x128xf32>
    %82 = arith.maximumf %76, %81 : vector<32x128xf32>
    %c13_i32 = arith.constant 13 : i32
    %c8_i32_44 = arith.constant 8 : i32
    %83 = arith.muli %c13_i32, %c8_i32_44 : i32
    %84 = tpu.assume_multiple %83, 8 : i32
    %85 = arith.index_cast %84 : i32 to index
    %c0_45 = arith.constant 0 : index
    %86 = vector.load %arg5[%85, %c0_45] : memref<128x128xbf16, #tpu.memory_space<vmem>>, vector<8x128xbf16>
    %cst_46 = arith.constant dense<0.000000e+00> : vector<32x128xf32>
    %87 = tpu.matmul %3, %86, %cst_46 {dimension_numbers = #tpu.dot_dimension_numbers<[1], [0], [0], [1], [0, 0, 1, 1], [], []>} : vector<32x8xbf16>, vector<8x128xbf16>, vector<32x128xf32> -> vector<32x128xf32>
    %88 = arith.maximumf %82, %87 : vector<32x128xf32>
    %c14_i32 = arith.constant 14 : i32
    %c8_i32_47 = arith.constant 8 : i32
    %89 = arith.muli %c14_i32, %c8_i32_47 : i32
    %90 = tpu.assume_multiple %89, 8 : i32
    %91 = arith.index_cast %90 : i32 to index
    %c0_48 = arith.constant 0 : index
    %92 = vector.load %arg5[%91, %c0_48] : memref<128x128xbf16, #tpu.memory_space<vmem>>, vector<8x128xbf16>
    %cst_49 = arith.constant dense<0.000000e+00> : vector<32x128xf32>
    %93 = tpu.matmul %3, %92, %cst_49 {dimension_numbers = #tpu.dot_dimension_numbers<[1], [0], [0], [1], [0, 0, 1, 1], [], []>} : vector<32x8xbf16>, vector<8x128xbf16>, vector<32x128xf32> -> vector<32x128xf32>
    %94 = arith.maximumf %88, %93 : vector<32x128xf32>
    %c15_i32 = arith.constant 15 : i32
    %c8_i32_50 = arith.constant 8 : i32
    %95 = arith.muli %c15_i32, %c8_i32_50 : i32
    %96 = tpu.assume_multiple %95, 8 : i32
    %97 = arith.index_cast %96 : i32 to index
    %c0_51 = arith.constant 0 : index
    %98 = vector.load %arg5[%97, %c0_51] : memref<128x128xbf16, #tpu.memory_space<vmem>>, vector<8x128xbf16>
    %cst_52 = arith.constant dense<0.000000e+00> : vector<32x128xf32>
    %99 = tpu.matmul %3, %98, %cst_52 {dimension_numbers = #tpu.dot_dimension_numbers<[1], [0], [0], [1], [0, 0, 1, 1], [], []>} : vector<32x8xbf16>, vector<8x128xbf16>, vector<32x128xf32> -> vector<32x128xf32>
    %100 = arith.maximumf %94, %99 : vector<32x128xf32>
    %c16_i32 = arith.constant 16 : i32
    %c0_53 = arith.constant 0 : index
    %c0_54 = arith.constant 0 : index
    %101 = vector.load %arg3[%c0_53, %c0_54] : memref<32x1xf32, #tpu.memory_space<vmem>>, vector<32x1xf32>
    %102 = vector.broadcast %101 : vector<32x1xf32> to vector<32x128xf32>
    %103 = arith.addf %100, %102 : vector<32x128xf32>
    %cst_55 = arith.constant 0.000000e+00 : f32
    %104 = vector.broadcast %cst_55 : f32 to vector<32x128xf32>
    %105 = arith.maximumf %103, %104 : vector<32x128xf32>
    %c0_56 = arith.constant 0 : index
    %c0_57 = arith.constant 0 : index
    %106 = vector.load %arg4[%c0_56, %c0_57] : memref<32x128xf32, #tpu.memory_space<vmem>>, vector<32x128xf32>
    tpu.vector_store %arg4[%c0_56, %c0_57], %105 {strides = array<i32>} : memref<32x128xf32, #tpu.memory_space<vmem>>, vector<32x128xf32>,
    return
  }
  func.func @transform_0(%arg0: i32) -> (i32, i32) {
    %c0_i32 = arith.constant 0 : i32
    %c0_i32_0 = arith.constant 0 : i32
    return %arg0, %c0_i32 : i32, i32
  }
  func.func @transform_1(%arg0: i32) -> (i32, i32) {
    %c0_i32 = arith.constant 0 : i32
    %c0_i32_0 = arith.constant 0 : i32
    %c0_i32_1 = arith.constant 0 : i32
    return %c0_i32, %c0_i32_0 : i32, i32
  }
  func.func @transform_2(%arg0: i32) -> (i32, i32) {
    %c0_i32 = arith.constant 0 : i32
    %c0_i32_0 = arith.constant 0 : i32
    %c0_i32_1 = arith.constant 0 : i32
    return %c0_i32, %c0_i32_0 : i32, i32
  }
  func.func @transform_3(%arg0: i32) -> (i32, i32) {
    %c0_i32 = arith.constant 0 : i32
    %c0_i32_0 = arith.constant 0 : i32
    return %c0_i32, %arg0 : i32, i32
  }
}

</mosaic_0001>

<llo_original>
// kernel: quant_model_forward.1
$region0: #{quant_model_forward.1}
  #allocation0 [shape = 'u32[]', space=smem, size = 0x4, offset = 0x4, fixed_abs, tag = 'smem constant byte address 0x4 - core index']
  #allocation1 [shape = 'u32[144,128]{1,0:T(1,128)}', space=vmem, size = 0x12000, scoped, tag = 'internal scratch']
  #allocation2 [shape = 'bf16[128,128]{1,0:T(8,128)(2,1)}', space=vmem, size = 0x8000, scoped, tag = 'scratch operand']
  %s0 = inlined_call_operand.vmem [shape: bf16[512,128], index: 0, kind: input, shape index: {}]
  %s1 = inlined_call_operand.vmem [shape: bf16[32,8], index: 1, kind: input, shape index: {}]
  %s2 = inlined_call_operand.vmem [shape: f32[32,1], index: 2, kind: input, shape index: {}]
  %s3 = inlined_call_operand.vmem [shape: f32[32,512], index: 3, kind: output, shape index: {}]
  %s4 = sld [smem:[#allocation0]]
  $region79: #{quant_model_forward.1} parent=0
    _
  %s6 = ssub.s32 1, %s4
  %s7 = scalar_select 0, %s6, %s4
  $region1: #{quant_model_forward.1} parent=0
    #allocation3 [shape = 'u8[32768]{0}', space=vmem, size = 0x8000, scoped, tag = 'output window, operand 0']
    loop: start=0, step=1, limit=6
    $region2: #{quant_model_forward.1} parent=1 // loop_pre_header
      _
    $region3: #{quant_model_forward.1} parent=1 // loop_header
      %s9 = sphi 0, %s13
      %p10 = scmp.ge.s32.totalorder %s9, 6
      %s19 = sphi 0, %s21
      %s22 = sphi 0, %s19
      %s23 = sphi 0, %s22
      %s39 = sphi 0, %s23
      %s43 = sphi 0, %s43
      %s45 = sphi 0, %s43
      %s46 = sphi 0, %s45
      %s60 = sphi 0, %s46
      %s64 = sphi 0, %s64
      %s66 = sphi 0, %s64
      %s67 = sphi 0, %s66
      %s81 = sphi 0, %s67
      %s87 = sphi 0, %s89
      %s90 = sphi 0, %s87
      %s91 = sphi 0, %s90
      %s107 = sphi 0, %s91
    $region4: #{quant_model_forward.1} parent=1 // loop_header_branch
      %12 = sbr.rel (%p10) target = $region8
    $region5: #{quant_model_forward.1} parent=1 // loop_body
      %s14 = ssub.s32 %s9, 1
      %s15 = ssub.s32 %s9, 2
      %s16 = sadd.s32 %s9, 1
      %s17 = ssub.s32 %s9, %s16
      %p18 = scmp.eq.s32.totalorder %s17, 0
      %s20 = sadd.s32 %s19, 1
      %s21 = scalar_select %p18, %s19, %s20
      %p24 = pneg %p18
      %p25 = scmp.eq.s32.totalorder %s9, 3
      %p26 = por %p24, %p25
      %p27 = scmp.ne.s32.totalorder %s19, %s22
      %p28 = scmp.eq.s32.totalorder %s9, 0
      %p29 = por %p27, %p28
      %p30 = scmp.ne.s32.totalorder %s19, %s22
      %p31 = scmp.eq.s32.totalorder %s14, 3
      %p32 = por %p30, %p31
      %p33 = scmp.ne.s32.totalorder %s22, %s23
      %p34 = scmp.eq.s32.totalorder %s14, 0
      %p35 = por %p33, %p34
      %p36 = scmp.ne.s32.totalorder %s22, %s23
      %p37 = scmp.eq.s32.totalorder %s15, 3
      %p38 = por %p36, %p37
      %p40 = scmp.ne.s32.totalorder %s23, %s39
      %p41 = scmp.eq.s32.totalorder %s15, 0
      %p42 = por %p40, %p41
      %s44 = sadd.s32 %s43, 1
      %p47 = scmp.eq.s32.totalorder %s9, 3
      %p48 = scmp.ne.s32.totalorder %s43, %s45
      %p49 = scmp.eq.s32.totalorder %s9, 0
      %p50 = por %p48, %p49
      %p51 = scmp.ne.s32.totalorder %s43, %s45
      %p52 = scmp.eq.s32.totalorder %s14, 3
      %p53 = por %p51, %p52
      %p54 = scmp.ne.s32.totalorder %s45, %s46
      %p55 = scmp.eq.s32.totalorder %s14, 0
      %p56 = por %p54, %p55
      %p57 = scmp.ne.s32.totalorder %s45, %s46
      %p58 = scmp.eq.s32.totalorder %s15, 3
      %p59 = por %p57, %p58
      %p61 = scmp.ne.s32.totalorder %s46, %s60
      %p62 = scmp.eq.s32.totalorder %s15, 0
      %p63 = por %p61, %p62
      %s65 = sadd.s32 %s64, 1
      %p68 = scmp.eq.s32.totalorder %s9, 3
      %p69 = scmp.ne.s32.totalorder %s64, %s66
      %p70 = scmp.eq.s32.totalorder %s9, 0
      %p71 = por %p69, %p70
      %p72 = scmp.ne.s32.totalorder %s64, %s66
      %p73 = scmp.eq.s32.totalorder %s14, 3
      %p74 = por %p72, %p73
      %p75 = scmp.ne.s32.totalorder %s66, %s67
      %p76 = scmp.eq.s32.totalorder %s14, 0
      %p77 = por %p75, %p76
      %p78 = scmp.ne.s32.totalorder %s66, %s67
      %p79 = scmp.eq.s32.totalorder %s15, 3
      %p80 = por %p78, %p79
      %p82 = scmp.ne.s32.totalorder %s67, %s81
      %p83 = scmp.eq.s32.totalorder %s15, 0
      %p84 = por %p82, %p83
      %s85 = ssub.s32 %s9, %s16
      %p86 = scmp.eq.s32.totalorder %s85, 0
      %s88 = sadd.s32 %s87, 1
      %s89 = scalar_select %p86, %s87, %s88
      %p92 = pneg %p86
      %p93 = scmp.eq.s32.totalorder %s9, 3
      %p94 = por %p92, %p93
      %p95 = scmp.ne.s32.totalorder %s87, %s90
      %p96 = scmp.eq.s32.totalorder %s9, 0
      %p97 = por %p95, %p96
      %p98 = scmp.ne.s32.totalorder %s87, %s90
      %p99 = scmp.eq.s32.totalorder %s14, 3
      %p100 = por %p98, %p99
      %p101 = scmp.ne.s32.totalorder %s90, %s91
      %p102 = scmp.eq.s32.totalorder %s14, 0
      %p103 = por %p101, %p102
      %p104 = scmp.ne.s32.totalorder %s90, %s91
      %p105 = scmp.eq.s32.totalorder %s15, 3
      %p106 = por %p104, %p105
      %p108 = scmp.ne.s32.totalorder %s91, %s107
      %p109 = scmp.eq.s32.totalorder %s15, 0
      %p110 = por %p108, %p109
      %p111 = scmp.le.s32.totalorder 1, %s9
      %p112 = scmp.lt.s32.totalorder %s9, 5
      %p113 = pnand %p111, %p112
      %p114 = pneg %p113
      // Predicated region
      $region9: #{quant_model_forward.1} parent=5 // pred_check
        _
      $region10: #{quant_model_forward.1} parent=5 // pred_check_branch
        %116 = sbr.rel (%p113) target = $region12
      $region11: #{quant_model_forward.1} parent=5 // pred_region
        %s117 = ssub.s32 %s9, 1
        // Predicated region
        $region13: #{quant_model_forward.1} parent=11 // pred_check
          %p118 = pneg %p56
        $region14: #{quant_model_forward.1} parent=11 // pred_check_branch
          %120 = sbr.rel (%p118) target = $region16
        $region15: #{quant_model_forward.1} parent=11 // pred_region
          _
        $region16: #{quant_model_forward.1} parent=11 // pred_fallthru
          _
        // Predicated region
        $region17: #{quant_model_forward.1} parent=11 // pred_check
          %p121 = pneg %p77
        $region18: #{quant_model_forward.1} parent=11 // pred_check_branch
          %123 = sbr.rel (%p121) target = $region20
        $region19: #{quant_model_forward.1} parent=11 // pred_region
          _
        $region20: #{quant_model_forward.1} parent=11 // pred_fallthru
          _
      $region12: #{quant_model_forward.1} parent=5 // pred_fallthru
        _
      %p124 = scmp.lt.s32.totalorder %s9, 4
      // Predicated region
      $region21: #{quant_model_forward.1} parent=5 // pred_check
        %p125 = pneg %p124
      $region22: #{quant_model_forward.1} parent=5 // pred_check_branch
        %127 = sbr.rel (%p125) target = $region24
      $region23: #{quant_model_forward.1} parent=5 // pred_region
        // Predicated region
        $region25: #{quant_model_forward.1} parent=23 // pred_check
          %p128 = pneg %p29
        $region26: #{quant_model_forward.1} parent=23 // pred_check_branch
          %130 = sbr.rel (%p128) target = $region28
        $region27: #{quant_model_forward.1} parent=23 // pred_region
          %s131 = smul.u32 16, %s9
          %p132 = scmp.lt.s32.totalorder %s131, 63
          %s133 = scalar_select %p132, %s131, 63
          %s134 = smul.addr %s133, 4
          %s135 = scalar_lea.vmem %s0, %s134
          %s136 = smul.u32 16, %s9
        $region28: #{quant_model_forward.1} parent=23 // pred_fallthru
          _
      $region24: #{quant_model_forward.1} parent=5 // pred_fallthru
        _
      %p137 = scmp.le.s32.totalorder 1, %s9
      %p138 = scmp.lt.s32.totalorder %s9, 5
      %p139 = pnand %p137, %p138
      %p140 = pneg %p139
      // Predicated region
      $region29: #{quant_model_forward.1} parent=5 // pred_check
        _
      $region30: #{quant_model_forward.1} parent=5 // pred_check_branch
        %142 = sbr.rel (%p139) target = $region32
      $region31: #{quant_model_forward.1} parent=5 // pred_region
        %s143 = ssub.s32 %s9, 1
        %s144 = smul.u32 16, %s14
        %p145 = scmp.lt.s32.totalorder %s144, 63
        %s146 = scalar_select %p145, %s144, 63
        %s147 = smul.addr %s146, 4
        %s148 = scalar_lea.vmem %s0, %s147
        %p149 = pneg %p35
        %p150 = pneg %p32
        %p151 = pneg %p56
        %p152 = pneg %p53
        %p153 = pneg %p77
        %p154 = pneg %p74
        %p155 = pneg %p103
        %p156 = pneg %p100
        %s157 = sand.u32 %s90, 1
        %s158 = sand.u32 %s90, 1
        %s159 = smul.addr %s158, 32
        %s160 = scalar_lea.vmem [#allocation3], %s159
        %s161 = smul.u32 16, %s14
        %p162 = scmp.lt.s32.totalorder %s161, 63
        %s163 = scalar_select %p162, %s161, 63
        %s164 = smul.addr %s163, 4
        %s165 = scalar_lea.vmem %s0, %s164
        %s166 = smul.u32 16, %s14
        %v168 = vld [vmem:[%s165] sm:$0xf]
        %v169 = vld [vmem:[%s165 + $0x4] sm:$0xf]
        %v170 = vld [vmem:[%s165 + $0x8] sm:$0xf]
        %v171 = vld [vmem:[%s165 + $0xc] sm:$0xf]
        %v172 = vld [vmem:[%s165 + $0x10] sm:$0xf]
        %v173 = vld [vmem:[%s165 + $0x14] sm:$0xf]
        %v174 = vld [vmem:[%s165 + $0x18] sm:$0xf]
        %v175 = vld [vmem:[%s165 + $0x1c] sm:$0xf]
        %v176 = vld [vmem:[%s165 + $0x20] sm:$0xf]
        %v177 = vld [vmem:[%s165 + $0x24] sm:$0xf]
        %v178 = vld [vmem:[%s165 + $0x28] sm:$0xf]
        %v179 = vld [vmem:[%s165 + $0x2c] sm:$0xf]
        %v180 = vld [vmem:[%s165 + $0x30] sm:$0xf]
        %v181 = vld [vmem:[%s165 + $0x34] sm:$0xf]
        %v182 = vld [vmem:[%s165 + $0x38] sm:$0xf]
        %v183 = vld [vmem:[%s165 + $0x3c] sm:$0xf]
        %v200 = vunpack.c.l.b16 %v168
        %v201 = vunpack.c.l.b16 %v169
        %v202 = vunpack.c.l.b16 %v170
        %v203 = vunpack.c.l.b16 %v171
        %v204 = vunpack.c.l.b16 %v172
        %v205 = vunpack.c.l.b16 %v173
        %v206 = vunpack.c.l.b16 %v174
        %v207 = vunpack.c.l.b16 %v175
        %v208 = vunpack.c.l.b16 %v176
        %v209 = vunpack.c.l.b16 %v177
        %v210 = vunpack.c.l.b16 %v178
        %v211 = vunpack.c.l.b16 %v179
        %v212 = vunpack.c.l.b16 %v180
        %v213 = vunpack.c.l.b16 %v181
        %v214 = vunpack.c.l.b16 %v182
        %v215 = vunpack.c.l.b16 %v183
        %v216 = vpack.c.b16 %v201, %v200
        %v217 = vpack.c.b16 %v203, %v202
        %v218 = vpack.c.b16 %v205, %v204
        %v219 = vpack.c.b16 %v207, %v206
        %v220 = vpack.c.b16 %v209, %v208
        %v221 = vpack.c.b16 %v211, %v210
        %v222 = vpack.c.b16 %v213, %v212
        %v223 = vpack.c.b16 %v215, %v214
        %232 = vxpose.xlu0.c.b16.start [1/8] %v216, 128
        %233 = vxpose.xlu0.c.b16.cont [2/8] %v217, 128
        %234 = vxpose.xlu0.c.b16.cont [3/8] %v218, 128
        %235 = vxpose.xlu0.c.b16.cont [4/8] %v219, 128
        %236 = vxpose.xlu0.c.b16.cont [5/8] %v220, 128
        %237 = vxpose.xlu0.c.b16.cont [6/8] %v221, 128
        %238 = vxpose.xlu0.c.b16.cont [7/8] %v222, 128
        %239 = vxpose.xlu0.c.b16.end [8/8] %v223, 128
        %v240 = vpop.trf.xlu0
        %v241 = vpop.trf.xlu0
        %v242 = vpop.trf.xlu0
        %v243 = vpop.trf.xlu0
        %v244 = vpop.trf.xlu0
        %v245 = vpop.trf.xlu0
        %v246 = vpop.trf.xlu0
        %v247 = vpop.trf.xlu0
        %v256 = vunpack.c.l.b16 %v240
        %v257 = vunpack.c.h.b16 %v240
        %v258 = vunpack.c.l.b16 %v241
        %v259 = vunpack.c.h.b16 %v241
        %v260 = vunpack.c.l.b16 %v242
        %v261 = vunpack.c.h.b16 %v242
        %v262 = vunpack.c.l.b16 %v243
        %v263 = vunpack.c.h.b16 %v243
        %v264 = vunpack.c.l.b16 %v244
        %v265 = vunpack.c.h.b16 %v244
        %v266 = vunpack.c.l.b16 %v245
        %v267 = vunpack.c.h.b16 %v245
        %v268 = vunpack.c.l.b16 %v246
        %v269 = vunpack.c.h.b16 %v246
        %v270 = vunpack.c.l.b16 %v247
        %v271 = vunpack.c.h.b16 %v247
        %v272 = vpack.c.b16 %v256, %v256
        %v273 = vpack.c.b16 %v257, %v257
        %v274 = vpack.c.b16 %v258, %v258
        %v275 = vpack.c.b16 %v259, %v259
        %v276 = vpack.c.b16 %v260, %v260
        %v277 = vpack.c.b16 %v261, %v261
        %v278 = vpack.c.b16 %v262, %v262
        %v279 = vpack.c.b16 %v263, %v263
        %v280 = vpack.c.b16 %v264, %v264
        %v281 = vpack.c.b16 %v265, %v265
        %v282 = vpack.c.b16 %v266, %v266
        %v283 = vpack.c.b16 %v267, %v267
        %v284 = vpack.c.b16 %v268, %v268
        %v285 = vpack.c.b16 %v269, %v269
        %v286 = vpack.c.b16 %v270, %v270
        %v287 = vpack.c.b16 %v271, %v271
        %304 = vst [vmem:[#allocation2] sm:$0xf] %v272
        %305 = vst [vmem:[#allocation2 + $0x4] sm:$0xf] %v273
        %306 = vst [vmem:[#allocation2 + $0x8] sm:$0xf] %v274
        %307 = vst [vmem:[#allocation2 + $0xc] sm:$0xf] %v275
        %308 = vst [vmem:[#allocation2 + $0x10] sm:$0xf] %v276
        %309 = vst [vmem:[#allocation2 + $0x14] sm:$0xf] %v277
        %310 = vst [vmem:[#allocation2 + $0x18] sm:$0xf] %v278
        %311 = vst [vmem:[#allocation2 + $0x1c] sm:$0xf] %v279
        %312 = vst [vmem:[#allocation2 + $0x20] sm:$0xf] %v280
        %313 = vst [vmem:[#allocation2 + $0x24] sm:$0xf] %v281
        %314 = vst [vmem:[#allocation2 + $0x28] sm:$0xf] %v282
        %315 = vst [vmem:[#allocation2 + $0x2c] sm:$0xf] %v283
        %316 = vst [vmem:[#allocation2 + $0x30] sm:$0xf] %v284
        %317 = vst [vmem:[#allocation2 + $0x34] sm:$0xf] %v285
        %318 = vst [vmem:[#allocation2 + $0x38] sm:$0xf] %v286
        %319 = vst [vmem:[#allocation2 + $0x3c] sm:$0xf] %v287
        %v320 = vld [vmem:[%s1] sm:$0xf]
        %v321 = vld [vmem:[%s1 + $0x4] sm:$0xf]
        %v322 = vld [vmem:[%s1 + $0x8] sm:$0xf]
        %v323 = vld [vmem:[%s1 + $0xc] sm:$0xf]
        %v324 = vld [vmem:[#allocation2] sm:$0xf]
        %v329 = vunpack.c.l.b16 %v320
        %v330 = vunpack.c.l.b16 %v321
        %v331 = vunpack.c.l.b16 %v322
        %v332 = vunpack.c.l.b16 %v323
        %v333 = vpack.c.b16 %v330, %v329
        %v334 = vpack.c.b16 %v332, %v331
        %vm335 = vcmask 64512
        %v337 = vsel %vm335, %v333, 0
        %v340 = vsel %vm335, %v334, 0
        %vm342 = vcmask 1043456
        %v344 = vsel %vm342, %v324, 0
        %346 = vmatprep.subr.bf16.mxu0 0
        %347 = vmatpush1.bf16.msra.mxu0 0
        %348 = vmatprep.subr.bf16.mxu0 0
        %349 = vmatpush1.bf16.msra.mxu0 0
        %350 = vmatprep.subr.bf16.mxu0 0
        %351 = vmatpush1.bf16.msra.mxu0 0
        %352 = vmatprep.subr.bf16.mxu0 0
        %353 = vmatpush1.bf16.msra.mxu0 0
        %354 = vmatprep.subr.bf16.mxu0 0
        %355 = vmatpush1.bf16.msra.mxu0 0
        %356 = vmatprep.subr.bf16.mxu0 0
        %357 = vmatpush1.bf16.msra.mxu0 0
        %358 = vmatprep.subr.bf16.mxu0 0
        %359 = vmatpush1.bf16.msra.mxu0 0
        %360 = vmatprep.subr.bf16.mxu0 0
        %361 = vmatpush1.bf16.msra.mxu0 %v344
        %362 = vmatprep.subr.bf16.mxu0 0
        %363 = vmatpush2.bf16.msra.mxu0 0
        %364 = vmatprep.subr.bf16.mxu0 0
        %365 = vmatpush2.bf16.msra.mxu0 0
        %366 = vmatprep.subr.bf16.mxu0 0
        %367 = vmatpush2.bf16.msra.mxu0 0
        %368 = vmatprep.subr.bf16.mxu0 0
        %369 = vmatpush2.bf16.msra.mxu0 0
        %370 = vmatprep.subr.bf16.mxu0 0
        %371 = vmatpush2.bf16.msra.mxu0 0
        %372 = vmatprep.subr.bf16.mxu0 0
        %373 = vmatpush2.bf16.msra.mxu0 0
        %374 = vmatprep.subr.bf16.mxu0 0
        %375 = vmatpush2.bf16.msra.mxu0 0
        %376 = vmatprep.subr.bf16.mxu0 0
        %377 = vmatpush2.bf16.msra.mxu0 0
        %378 = vmatprep.mubr.bf16.mxu0 0
        %379 = vmatmul.mubr.bf16.gmra.mxu0 %v337
        %v380 = vpop.f32.mrf.mxu0
        %v381 = vadd.f32 0.0, %v380
        %v382 = vpop.f32.mrf.mxu0
        %v383 = vpop.f32.mrf.mxu0
        %v384 = vadd.f32 0.0, %v383
        %v385 = vpop.f32.mrf.mxu0
        %386 = vmatprep.mubr.bf16.mxu0 0
        %387 = vmatmul.mubr.bf16.gmra.mxu0 %v340
        %v388 = vpop.f32.mrf.mxu0
        %v389 = vadd.f32 0.0, %v388
        %v390 = vpop.f32.mrf.mxu0
        %v391 = vpop.f32.mrf.mxu0
        %v392 = vadd.f32 0.0, %v391
        %v393 = vpop.f32.mrf.mxu0
        %394 = vdwg.mxu0
        %v395 = vmax.f32 %v381, -3.4028235e+38
        %v396 = vmax.f32 %v384, -3.4028235e+38
        %v397 = vmax.f32 %v389, -3.4028235e+38
        %v398 = vmax.f32 %v392, -3.4028235e+38
        %s399 = scalar_lea.vmem [#allocation2], 4
        %v400 = vld [vmem:[%s399] sm:$0xf]
        %v402 = vsel %vm342, %v400, 0
        %404 = vmatprep.subr.bf16.mxu0 0
        %405 = vmatpush1.bf16.msra.mxu0 0
        %406 = vmatprep.subr.bf16.mxu0 0
        %407 = vmatpush1.bf16.msra.mxu0 0
        %408 = vmatprep.subr.bf16.mxu0 0
        %409 = vmatpush1.bf16.msra.mxu0 0
        %410 = vmatprep.subr.bf16.mxu0 0
        %411 = vmatpush1.bf16.msra.mxu0 0
        %412 = vmatprep.subr.bf16.mxu0 0
        %413 = vmatpush1.bf16.msra.mxu0 0
        %414 = vmatprep.subr.bf16.mxu0 0
        %415 = vmatpush1.bf16.msra.mxu0 0
        %416 = vmatprep.subr.bf16.mxu0 0
        %417 = vmatpush1.bf16.msra.mxu0 0
        %418 = vmatprep.subr.bf16.mxu0 0
        %419 = vmatpush1.bf16.msra.mxu0 %v402
        %420 = vmatprep.subr.bf16.mxu0 0
        %421 = vmatpush2.bf16.msra.mxu0 0
        %422 = vmatprep.subr.bf16.mxu0 0
        %423 = vmatpush2.bf16.msra.mxu0 0
        %424 = vmatprep.subr.bf16.mxu0 0
        %425 = vmatpush2.bf16.msra.mxu0 0
        %426 = vmatprep.subr.bf16.mxu0 0
        %427 = vmatpush2.bf16.msra.mxu0 0
        %428 = vmatprep.subr.bf16.mxu0 0
        %429 = vmatpush2.bf16.msra.mxu0 0
        %430 = vmatprep.subr.bf16.mxu0 0
        %431 = vmatpush2.bf16.msra.mxu0 0
        %432 = vmatprep.subr.bf16.mxu0 0
        %433 = vmatpush2.bf16.msra.mxu0 0
        %434 = vmatprep.subr.bf16.mxu0 0
        %435 = vmatpush2.bf16.msra.mxu0 0
        %436 = vmatprep.mubr.bf16.mxu0 0
        %437 = vmatmul.mubr.bf16.gmra.mxu0 %v337
        %v438 = vpop.f32.mrf.mxu0
        %v439 = vadd.f32 0.0, %v438
        %v440 = vpop.f32.mrf.mxu0
        %v441 = vpop.f32.mrf.mxu0
        %v442 = vadd.f32 0.0, %v441
        %v443 = vpop.f32.mrf.mxu0
        %444 = vmatprep.mubr.bf16.mxu0 0
        %445 = vmatmul.mubr.bf16.gmra.mxu0 %v340
        %v446 = vpop.f32.mrf.mxu0
        %v447 = vadd.f32 0.0, %v446
        %v448 = vpop.f32.mrf.mxu0
        %v449 = vpop.f32.mrf.mxu0
        %v450 = vadd.f32 0.0, %v449
        %v451 = vpop.f32.mrf.mxu0
        %452 = vdwg.mxu0
        %v453 = vmax.f32 %v395, %v439
        %v454 = vmax.f32 %v396, %v442
        %v455 = vmax.f32 %v397, %v447
        %v456 = vmax.f32 %v398, %v450
        %s457 = scalar_lea.vmem [#allocation2], 8
        %v458 = vld [vmem:[%s457] sm:$0xf]
        %v460 = vsel %vm342, %v458, 0
        %462 = vmatprep.subr.bf16.mxu0 0
        %463 = vmatpush1.bf16.msra.mxu0 0
        %464 = vmatprep.subr.bf16.mxu0 0
        %465 = vmatpush1.bf16.msra.mxu0 0
        %466 = vmatprep.subr.bf16.mxu0 0
        %467 = vmatpush1.bf16.msra.mxu0 0
        %468 = vmatprep.subr.bf16.mxu0 0
        %469 = vmatpush1.bf16.msra.mxu0 0
        %470 = vmatprep.subr.bf16.mxu0 0
        %471 = vmatpush1.bf16.msra.mxu0 0
        %472 = vmatprep.subr.bf16.mxu0 0
        %473 = vmatpush1.bf16.msra.mxu0 0
        %474 = vmatprep.subr.bf16.mxu0 0
        %475 = vmatpush1.bf16.msra.mxu0 0
        %476 = vmatprep.subr.bf16.mxu0 0
        %477 = vmatpush1.bf16.msra.mxu0 %v460
        %478 = vmatprep.subr.bf16.mxu0 0
        %479 = vmatpush2.bf16.msra.mxu0 0
        %480 = vmatprep.subr.bf16.mxu0 0
        %481 = vmatpush2.bf16.msra.mxu0 0
        %482 = vmatprep.subr.bf16.mxu0 0
        %483 = vmatpush2.bf16.msra.mxu0 0
        %484 = vmatprep.subr.bf16.mxu0 0
        %485 = vmatpush2.bf16.msra.mxu0 0
        %486 = vmatprep.subr.bf16.mxu0 0
        %487 = vmatpush2.bf16.msra.mxu0 0
        %488 = vmatprep.subr.bf16.mxu0 0
        %489 = vmatpush2.bf16.msra.mxu0 0
        %490 = vmatprep.subr.bf16.mxu0 0
        %491 = vmatpush2.bf16.msra.mxu0 0
        %492 = vmatprep.subr.bf16.mxu0 0
        %493 = vmatpush2.bf16.msra.mxu0 0
        %494 = vmatprep.mubr.bf16.mxu0 0
        %495 = vmatmul.mubr.bf16.gmra.mxu0 %v337
        %v496 = vpop.f32.mrf.mxu0
        %v497 = vadd.f32 0.0, %v496
        %v498 = vpop.f32.mrf.mxu0
        %v499 = vpop.f32.mrf.mxu0
        %v500 = vadd.f32 0.0, %v499
        %v501 = vpop.f32.mrf.mxu0
        %502 = vmatprep.mubr.bf16.mxu0 0
        %503 = vmatmul.mubr.bf16.gmra.mxu0 %v340
        %v504 = vpop.f32.mrf.mxu0
        %v505 = vadd.f32 0.0, %v504
        %v506 = vpop.f32.mrf.mxu0
        %v507 = vpop.f32.mrf.mxu0
        %v508 = vadd.f32 0.0, %v507
        %v509 = vpop.f32.mrf.mxu0
        %510 = vdwg.mxu0
        %v511 = vmax.f32 %v453, %v497
        %v512 = vmax.f32 %v454, %v500
        %v513 = vmax.f32 %v455, %v505
        %v514 = vmax.f32 %v456, %v508
        %s515 = scalar_lea.vmem [#allocation2], 12
        %v516 = vld [vmem:[%s515] sm:$0xf]
        %v518 = vsel %vm342, %v516, 0
        %520 = vmatprep.subr.bf16.mxu0 0
        %521 = vmatpush1.bf16.msra.mxu0 0
        %522 = vmatprep.subr.bf16.mxu0 0
        %523 = vmatpush1.bf16.msra.mxu0 0
        %524 = vmatprep.subr.bf16.mxu0 0
        %525 = vmatpush1.bf16.msra.mxu0 0
        %526 = vmatprep.subr.bf16.mxu0 0
        %527 = vmatpush1.bf16.msra.mxu0 0
        %528 = vmatprep.subr.bf16.mxu0 0
        %529 = vmatpush1.bf16.msra.mxu0 0
        %530 = vmatprep.subr.bf16.mxu0 0
        %531 = vmatpush1.bf16.msra.mxu0 0
        %532 = vmatprep.subr.bf16.mxu0 0
        %533 = vmatpush1.bf16.msra.mxu0 0
        %534 = vmatprep.subr.bf16.mxu0 0
        %535 = vmatpush1.bf16.msra.mxu0 %v518
        %536 = vmatprep.subr.bf16.mxu0 0
        %537 = vmatpush2.bf16.msra.mxu0 0
        %538 = vmatprep.subr.bf16.mxu0 0
        %539 = vmatpush2.bf16.msra.mxu0 0
        %540 = vmatprep.subr.bf16.mxu0 0
        %541 = vmatpush2.bf16.msra.mxu0 0
        %542 = vmatprep.subr.bf16.mxu0 0
        %543 = vmatpush2.bf16.msra.mxu0 0
        %544 = vmatprep.subr.bf16.mxu0 0
        %545 = vmatpush2.bf16.msra.mxu0 0
        %546 = vmatprep.subr.bf16.mxu0 0
        %547 = vmatpush2.bf16.msra.mxu0 0
        %548 = vmatprep.subr.bf16.mxu0 0
        %549 = vmatpush2.bf16.msra.mxu0 0
        %550 = vmatprep.subr.bf16.mxu0 0
        %551 = vmatpush2.bf16.msra.mxu0 0
        %552 = vmatprep.mubr.bf16.mxu0 0
        %553 = vmatmul.mubr.bf16.gmra.mxu0 %v337
        %v554 = vpop.f32.mrf.mxu0
        %v555 = vadd.f32 0.0, %v554
        %v556 = vpop.f32.mrf.mxu0
        %v557 = vpop.f32.mrf.mxu0
        %v558 = vadd.f32 0.0, %v557
        %v559 = vpop.f32.mrf.mxu0
        %560 = vmatprep.mubr.bf16.mxu0 0
        %561 = vmatmul.mubr.bf16.gmra.mxu0 %v340
        %v562 = vpop.f32.mrf.mxu0
        %v563 = vadd.f32 0.0, %v562
        %v564 = vpop.f32.mrf.mxu0
        %v565 = vpop.f32.mrf.mxu0
        %v566 = vadd.f32 0.0, %v565
        %v567 = vpop.f32.mrf.mxu0
        %568 = vdwg.mxu0
        %v569 = vmax.f32 %v511, %v555
        %v570 = vmax.f32 %v512, %v558
        %v571 = vmax.f32 %v513, %v563
        %v572 = vmax.f32 %v514, %v566
        %s573 = scalar_lea.vmem [#allocation2], 16
        %v574 = vld [vmem:[%s573] sm:$0xf]
        %v576 = vsel %vm342, %v574, 0
        %578 = vmatprep.subr.bf16.mxu0 0
        %579 = vmatpush1.bf16.msra.mxu0 0
        %580 = vmatprep.subr.bf16.mxu0 0
        %581 = vmatpush1.bf16.msra.mxu0 0
        %582 = vmatprep.subr.bf16.mxu0 0
        %583 = vmatpush1.bf16.msra.mxu0 0
        %584 = vmatprep.subr.bf16.mxu0 0
        %585 = vmatpush1.bf16.msra.mxu0 0
        %586 = vmatprep.subr.bf16.mxu0 0
        %587 = vmatpush1.bf16.msra.mxu0 0
        %588 = vmatprep.subr.bf16.mxu0 0
        %589 = vmatpush1.bf16.msra.mxu0 0
        %590 = vmatprep.subr.bf16.mxu0 0
        %591 = vmatpush1.bf16.msra.mxu0 0
        %592 = vmatprep.subr.bf16.mxu0 0
        %593 = vmatpush1.bf16.msra.mxu0 %v576
        %594 = vmatprep.subr.bf16.mxu0 0
        %595 = vmatpush2.bf16.msra.mxu0 0
        %596 = vmatprep.subr.bf16.mxu0 0
        %597 = vmatpush2.bf16.msra.mxu0 0
        %598 = vmatprep.subr.bf16.mxu0 0
        %599 = vmatpush2.bf16.msra.mxu0 0
        %600 = vmatprep.subr.bf16.mxu0 0
        %601 = vmatpush2.bf16.msra.mxu0 0
        %602 = vmatprep.subr.bf16.mxu0 0
        %603 = vmatpush2.bf16.msra.mxu0 0
        %604 = vmatprep.subr.bf16.mxu0 0
        %605 = vmatpush2.bf16.msra.mxu0 0
        %606 = vmatprep.subr.bf16.mxu0 0
        %607 = vmatpush2.bf16.msra.mxu0 0
        %608 = vmatprep.subr.bf16.mxu0 0
        %609 = vmatpush2.bf16.msra.mxu0 0
        %610 = vmatprep.mubr.bf16.mxu0 0
        %611 = vmatmul.mubr.bf16.gmra.mxu0 %v337
        %v612 = vpop.f32.mrf.mxu0
        %v613 = vadd.f32 0.0, %v612
        %v614 = vpop.f32.mrf.mxu0
        %v615 = vpop.f32.mrf.mxu0
        %v616 = vadd.f32 0.0, %v615
        %v617 = vpop.f32.mrf.mxu0
        %618 = vmatprep.mubr.bf16.mxu0 0
        %619 = vmatmul.mubr.bf16.gmra.mxu0 %v340
        %v620 = vpop.f32.mrf.mxu0
        %v621 = vadd.f32 0.0, %v620
        %v622 = vpop.f32.mrf.mxu0
        %v623 = vpop.f32.mrf.mxu0
        %v624 = vadd.f32 0.0, %v623
        %v625 = vpop.f32.mrf.mxu0
        %626 = vdwg.mxu0
        %v627 = vmax.f32 %v569, %v613
        %v628 = vmax.f32 %v570, %v616
        %v629 = vmax.f32 %v571, %v621
        %v630 = vmax.f32 %v572, %v624
        %s631 = scalar_lea.vmem [#allocation2], 20
        %v632 = vld [vmem:[%s631] sm:$0xf]
        %v634 = vsel %vm342, %v632, 0
        %636 = vmatprep.subr.bf16.mxu0 0
        %637 = vmatpush1.bf16.msra.mxu0 0
        %638 = vmatprep.subr.bf16.mxu0 0
        %639 = vmatpush1.bf16.msra.mxu0 0
        %640 = vmatprep.subr.bf16.mxu0 0
        %641 = vmatpush1.bf16.msra.mxu0 0
        %642 = vmatprep.subr.bf16.mxu0 0
        %643 = vmatpush1.bf16.msra.mxu0 0
        %644 = vmatprep.subr.bf16.mxu0 0
        %645 = vmatpush1.bf16.msra.mxu0 0
        %646 = vmatprep.subr.bf16.mxu0 0
        %647 = vmatpush1.bf16.msra.mxu0 0
        %648 = vmatprep.subr.bf16.mxu0 0
        %649 = vmatpush1.bf16.msra.mxu0 0
        %650 = vmatprep.subr.bf16.mxu0 0
        %651 = vmatpush1.bf16.msra.mxu0 %v634
        %652 = vmatprep.subr.bf16.mxu0 0
        %653 = vmatpush2.bf16.msra.mxu0 0
        %654 = vmatprep.subr.bf16.mxu0 0
        %655 = vmatpush2.bf16.msra.mxu0 0
        %656 = vmatprep.subr.bf16.mxu0 0
        %657 = vmatpush2.bf16.msra.mxu0 0
        %658 = vmatprep.subr.bf16.mxu0 0
        %659 = vmatpush2.bf16.msra.mxu0 0
        %660 = vmatprep.subr.bf16.mxu0 0
        %661 = vmatpush2.bf16.msra.mxu0 0
        %662 = vmatprep.subr.bf16.mxu0 0
        %663 = vmatpush2.bf16.msra.mxu0 0
        %664 = vmatprep.subr.bf16.mxu0 0
        %665 = vmatpush2.bf16.msra.mxu0 0
        %666 = vmatprep.subr.bf16.mxu0 0
        %667 = vmatpush2.bf16.msra.mxu0 0
        %668 = vmatprep.mubr.bf16.mxu0 0
        %669 = vmatmul.mubr.bf16.gmra.mxu0 %v337
        %v670 = vpop.f32.mrf.mxu0
        %v671 = vadd.f32 0.0, %v670
        %v672 = vpop.f32.mrf.mxu0
        %v673 = vpop.f32.mrf.mxu0
        %v674 = vadd.f32 0.0, %v673
        %v675 = vpop.f32.mrf.mxu0
        %676 = vmatprep.mubr.bf16.mxu0 0
        %677 = vmatmul.mubr.bf16.gmra.mxu0 %v340
        %v678 = vpop.f32.mrf.mxu0
        %v679 = vadd.f32 0.0, %v678
        %v680 = vpop.f32.mrf.mxu0
        %v681 = vpop.f32.mrf.mxu0
        %v682 = vadd.f32 0.0, %v681
        %v683 = vpop.f32.mrf.mxu0
        %684 = vdwg.mxu0
        %v685 = vmax.f32 %v627, %v671
        %v686 = vmax.f32 %v628, %v674
        %v687 = vmax.f32 %v629, %v679
        %v688 = vmax.f32 %v630, %v682
        %s689 = scalar_lea.vmem [#allocation2], 24
        %v690 = vld [vmem:[%s689] sm:$0xf]
        %v692 = vsel %vm342, %v690, 0
        %694 = vmatprep.subr.bf16.mxu0 0
        %695 = vmatpush1.bf16.msra.mxu0 0
        %696 = vmatprep.subr.bf16.mxu0 0
        %697 = vmatpush1.bf16.msra.mxu0 0
        %698 = vmatprep.subr.bf16.mxu0 0
        %699 = vmatpush1.bf16.msra.mxu0 0
        %700 = vmatprep.subr.bf16.mxu0 0
        %701 = vmatpush1.bf16.msra.mxu0 0
        %702 = vmatprep.subr.bf16.mxu0 0
        %703 = vmatpush1.bf16.msra.mxu0 0
        %704 = vmatprep.subr.bf16.mxu0 0
        %705 = vmatpush1.bf16.msra.mxu0 0
        %706 = vmatprep.subr.bf16.mxu0 0
        %707 = vmatpush1.bf16.msra.mxu0 0
        %708 = vmatprep.subr.bf16.mxu0 0
        %709 = vmatpush1.bf16.msra.mxu0 %v692
        %710 = vmatprep.subr.bf16.mxu0 0
        %711 = vmatpush2.bf16.msra.mxu0 0
        %712 = vmatprep.subr.bf16.mxu0 0
        %713 = vmatpush2.bf16.msra.mxu0 0
        %714 = vmatprep.subr.bf16.mxu0 0
        %715 = vmatpush2.bf16.msra.mxu0 0
        %716 = vmatprep.subr.bf16.mxu0 0
        %717 = vmatpush2.bf16.msra.mxu0 0
        %718 = vmatprep.subr.bf16.mxu0 0
        %719 = vmatpush2.bf16.msra.mxu0 0
        %720 = vmatprep.subr.bf16.mxu0 0
        %721 = vmatpush2.bf16.msra.mxu0 0
        %722 = vmatprep.subr.bf16.mxu0 0
        %723 = vmatpush2.bf16.msra.mxu0 0
        %724 = vmatprep.subr.bf16.mxu0 0
        %725 = vmatpush2.bf16.msra.mxu0 0
        %726 = vmatprep.mubr.bf16.mxu0 0
        %727 = vmatmul.mubr.bf16.gmra.mxu0 %v337
        %v728 = vpop.f32.mrf.mxu0
        %v729 = vadd.f32 0.0, %v728
        %v730 = vpop.f32.mrf.mxu0
        %v731 = vpop.f32.mrf.mxu0
        %v732 = vadd.f32 0.0, %v731
        %v733 = vpop.f32.mrf.mxu0
        %734 = vmatprep.mubr.bf16.mxu0 0
        %735 = vmatmul.mubr.bf16.gmra.mxu0 %v340
        %v736 = vpop.f32.mrf.mxu0
        %v737 = vadd.f32 0.0, %v736
        %v738 = vpop.f32.mrf.mxu0
        %v739 = vpop.f32.mrf.mxu0
        %v740 = vadd.f32 0.0, %v739
        %v741 = vpop.f32.mrf.mxu0
        %742 = vdwg.mxu0
        %v743 = vmax.f32 %v685, %v729
        %v744 = vmax.f32 %v686, %v732
        %v745 = vmax.f32 %v687, %v737
        %v746 = vmax.f32 %v688, %v740
        %s747 = scalar_lea.vmem [#allocation2], 28
        %v748 = vld [vmem:[%s747] sm:$0xf]
        %v750 = vsel %vm342, %v748, 0
        %752 = vmatprep.subr.bf16.mxu0 0
        %753 = vmatpush1.bf16.msra.mxu0 0
        %754 = vmatprep.subr.bf16.mxu0 0
        %755 = vmatpush1.bf16.msra.mxu0 0
        %756 = vmatprep.subr.bf16.mxu0 0
        %757 = vmatpush1.bf16.msra.mxu0 0
        %758 = vmatprep.subr.bf16.mxu0 0
        %759 = vmatpush1.bf16.msra.mxu0 0
        %760 = vmatprep.subr.bf16.mxu0 0
        %761 = vmatpush1.bf16.msra.mxu0 0
        %762 = vmatprep.subr.bf16.mxu0 0
        %763 = vmatpush1.bf16.msra.mxu0 0
        %764 = vmatprep.subr.bf16.mxu0 0
        %765 = vmatpush1.bf16.msra.mxu0 0
        %766 = vmatprep.subr.bf16.mxu0 0
        %767 = vmatpush1.bf16.msra.mxu0 %v750
        %768 = vmatprep.subr.bf16.mxu0 0
        %769 = vmatpush2.bf16.msra.mxu0 0
        %770 = vmatprep.subr.bf16.mxu0 0
        %771 = vmatpush2.bf16.msra.mxu0 0
        %772 = vmatprep.subr.bf16.mxu0 0
        %773 = vmatpush2.bf16.msra.mxu0 0
        %774 = vmatprep.subr.bf16.mxu0 0
        %775 = vmatpush2.bf16.msra.mxu0 0
        %776 = vmatprep.subr.bf16.mxu0 0
        %777 = vmatpush2.bf16.msra.mxu0 0
        %778 = vmatprep.subr.bf16.mxu0 0
        %779 = vmatpush2.bf16.msra.mxu0 0
        %780 = vmatprep.subr.bf16.mxu0 0
        %781 = vmatpush2.bf16.msra.mxu0 0
        %782 = vmatprep.subr.bf16.mxu0 0
        %783 = vmatpush2.bf16.msra.mxu0 0
        %784 = vmatprep.mubr.bf16.mxu0 0
        %785 = vmatmul.mubr.bf16.gmra.mxu0 %v337
        %v786 = vpop.f32.mrf.mxu0
        %v787 = vadd.f32 0.0, %v786
        %v788 = vpop.f32.mrf.mxu0
        %v789 = vpop.f32.mrf.mxu0
        %v790 = vadd.f32 0.0, %v789
        %v791 = vpop.f32.mrf.mxu0
        %792 = vmatprep.mubr.bf16.mxu0 0
        %793 = vmatmul.mubr.bf16.gmra.mxu0 %v340
        %v794 = vpop.f32.mrf.mxu0
        %v795 = vadd.f32 0.0, %v794
        %v796 = vpop.f32.mrf.mxu0
        %v797 = vpop.f32.mrf.mxu0
        %v798 = vadd.f32 0.0, %v797
        %v799 = vpop.f32.mrf.mxu0
        %800 = vdwg.mxu0
        %v801 = vmax.f32 %v743, %v787
        %v802 = vmax.f32 %v744, %v790
        %v803 = vmax.f32 %v745, %v795
        %v804 = vmax.f32 %v746, %v798
        %s805 = scalar_lea.vmem [#allocation2], 32
        %v806 = vld [vmem:[%s805] sm:$0xf]
        %v808 = vsel %vm342, %v806, 0
        %810 = vmatprep.subr.bf16.mxu0 0
        %811 = vmatpush1.bf16.msra.mxu0 0
        %812 = vmatprep.subr.bf16.mxu0 0
        %813 = vmatpush1.bf16.msra.mxu0 0
        %814 = vmatprep.subr.bf16.mxu0 0
        %815 = vmatpush1.bf16.msra.mxu0 0
        %816 = vmatprep.subr.bf16.mxu0 0
        %817 = vmatpush1.bf16.msra.mxu0 0
        %818 = vmatprep.subr.bf16.mxu0 0
        %819 = vmatpush1.bf16.msra.mxu0 0
        %820 = vmatprep.subr.bf16.mxu0 0
        %821 = vmatpush1.bf16.msra.mxu0 0
        %822 = vmatprep.subr.bf16.mxu0 0
        %823 = vmatpush1.bf16.msra.mxu0 0
        %824 = vmatprep.subr.bf16.mxu0 0
        %825 = vmatpush1.bf16.msra.mxu0 %v808
        %826 = vmatprep.subr.bf16.mxu0 0
        %827 = vmatpush2.bf16.msra.mxu0 0
        %828 = vmatprep.subr.bf16.mxu0 0
        %829 = vmatpush2.bf16.msra.mxu0 0
        %830 = vmatprep.subr.bf16.mxu0 0
        %831 = vmatpush2.bf16.msra.mxu0 0
        %832 = vmatprep.subr.bf16.mxu0 0
        %833 = vmatpush2.bf16.msra.mxu0 0
        %834 = vmatprep.subr.bf16.mxu0 0
        %835 = vmatpush2.bf16.msra.mxu0 0
        %836 = vmatprep.subr.bf16.mxu0 0
        %837 = vmatpush2.bf16.msra.mxu0 0
        %838 = vmatprep.subr.bf16.mxu0 0
        %839 = vmatpush2.bf16.msra.mxu0 0
        %840 = vmatprep.subr.bf16.mxu0 0
        %841 = vmatpush2.bf16.msra.mxu0 0
        %842 = vmatprep.mubr.bf16.mxu0 0
        %843 = vmatmul.mubr.bf16.gmra.mxu0 %v337
        %v844 = vpop.f32.mrf.mxu0
        %v845 = vadd.f32 0.0, %v844
        %v846 = vpop.f32.mrf.mxu0
        %v847 = vpop.f32.mrf.mxu0
        %v848 = vadd.f32 0.0, %v847
        %v849 = vpop.f32.mrf.mxu0
        %850 = vmatprep.mubr.bf16.mxu0 0
        %851 = vmatmul.mubr.bf16.gmra.mxu0 %v340
        %v852 = vpop.f32.mrf.mxu0
        %v853 = vadd.f32 0.0, %v852
        %v854 = vpop.f32.mrf.mxu0
        %v855 = vpop.f32.mrf.mxu0
        %v856 = vadd.f32 0.0, %v855
        %v857 = vpop.f32.mrf.mxu0
        %858 = vdwg.mxu0
        %v859 = vmax.f32 %v801, %v845
        %v860 = vmax.f32 %v802, %v848
        %v861 = vmax.f32 %v803, %v853
        %v862 = vmax.f32 %v804, %v856
        %s863 = scalar_lea.vmem [#allocation2], 36
        %v864 = vld [vmem:[%s863] sm:$0xf]
        %v866 = vsel %vm342, %v864, 0
        %868 = vmatprep.subr.bf16.mxu0 0
        %869 = vmatpush1.bf16.msra.mxu0 0
        %870 = vmatprep.subr.bf16.mxu0 0
        %871 = vmatpush1.bf16.msra.mxu0 0
        %872 = vmatprep.subr.bf16.mxu0 0
        %873 = vmatpush1.bf16.msra.mxu0 0
        %874 = vmatprep.subr.bf16.mxu0 0
        %875 = vmatpush1.bf16.msra.mxu0 0
        %876 = vmatprep.subr.bf16.mxu0 0
        %877 = vmatpush1.bf16.msra.mxu0 0
        %878 = vmatprep.subr.bf16.mxu0 0
        %879 = vmatpush1.bf16.msra.mxu0 0
        %880 = vmatprep.subr.bf16.mxu0 0
        %881 = vmatpush1.bf16.msra.mxu0 0
        %882 = vmatprep.subr.bf16.mxu0 0
        %883 = vmatpush1.bf16.msra.mxu0 %v866
        %884 = vmatprep.subr.bf16.mxu0 0
        %885 = vmatpush2.bf16.msra.mxu0 0
        %886 = vmatprep.subr.bf16.mxu0 0
        %887 = vmatpush2.bf16.msra.mxu0 0
        %888 = vmatprep.subr.bf16.mxu0 0
        %889 = vmatpush2.bf16.msra.mxu0 0
        %890 = vmatprep.subr.bf16.mxu0 0
        %891 = vmatpush2.bf16.msra.mxu0 0
        %892 = vmatprep.subr.bf16.mxu0 0
        %893 = vmatpush2.bf16.msra.mxu0 0
        %894 = vmatprep.subr.bf16.mxu0 0
        %895 = vmatpush2.bf16.msra.mxu0 0
        %896 = vmatprep.subr.bf16.mxu0 0
        %897 = vmatpush2.bf16.msra.mxu0 0
        %898 = vmatprep.subr.bf16.mxu0 0
        %899 = vmatpush2.bf16.msra.mxu0 0
        %900 = vmatprep.mubr.bf16.mxu0 0
        %901 = vmatmul.mubr.bf16.gmra.mxu0 %v337
        %v902 = vpop.f32.mrf.mxu0
        %v903 = vadd.f32 0.0, %v902
        %v904 = vpop.f32.mrf.mxu0
        %v905 = vpop.f32.mrf.mxu0
        %v906 = vadd.f32 0.0, %v905
        %v907 = vpop.f32.mrf.mxu0
        %908 = vmatprep.mubr.bf16.mxu0 0
        %909 = vmatmul.mubr.bf16.gmra.mxu0 %v340
        %v910 = vpop.f32.mrf.mxu0
        %v911 = vadd.f32 0.0, %v910
        %v912 = vpop.f32.mrf.mxu0
        %v913 = vpop.f32.mrf.mxu0
        %v914 = vadd.f32 0.0, %v913
        %v915 = vpop.f32.mrf.mxu0
        %916 = vdwg.mxu0
        %v917 = vmax.f32 %v859, %v903
        %v918 = vmax.f32 %v860, %v906
        %v919 = vmax.f32 %v861, %v911
        %v920 = vmax.f32 %v862, %v914
        %s921 = scalar_lea.vmem [#allocation2], 40
        %v922 = vld [vmem:[%s921] sm:$0xf]
        %v924 = vsel %vm342, %v922, 0
        %926 = vmatprep.subr.bf16.mxu0 0
        %927 = vmatpush1.bf16.msra.mxu0 0
        %928 = vmatprep.subr.bf16.mxu0 0
        %929 = vmatpush1.bf16.msra.mxu0 0
        %930 = vmatprep.subr.bf16.mxu0 0
        %931 = vmatpush1.bf16.msra.mxu0 0
        %932 = vmatprep.subr.bf16.mxu0 0
        %933 = vmatpush1.bf16.msra.mxu0 0
        %934 = vmatprep.subr.bf16.mxu0 0
        %935 = vmatpush1.bf16.msra.mxu0 0
        %936 = vmatprep.subr.bf16.mxu0 0
        %937 = vmatpush1.bf16.msra.mxu0 0
        %938 = vmatprep.subr.bf16.mxu0 0
        %939 = vmatpush1.bf16.msra.mxu0 0
        %940 = vmatprep.subr.bf16.mxu0 0
        %941 = vmatpush1.bf16.msra.mxu0 %v924
        %942 = vmatprep.subr.bf16.mxu0 0
        %943 = vmatpush2.bf16.msra.mxu0 0
        %944 = vmatprep.subr.bf16.mxu0 0
        %945 = vmatpush2.bf16.msra.mxu0 0
        %946 = vmatprep.subr.bf16.mxu0 0
        %947 = vmatpush2.bf16.msra.mxu0 0
        %948 = vmatprep.subr.bf16.mxu0 0
        %949 = vmatpush2.bf16.msra.mxu0 0
        %950 = vmatprep.subr.bf16.mxu0 0
        %951 = vmatpush2.bf16.msra.mxu0 0
        %952 = vmatprep.subr.bf16.mxu0 0
        %953 = vmatpush2.bf16.msra.mxu0 0
        %954 = vmatprep.subr.bf16.mxu0 0
        %955 = vmatpush2.bf16.msra.mxu0 0
        %956 = vmatprep.subr.bf16.mxu0 0
        %957 = vmatpush2.bf16.msra.mxu0 0
        %958 = vmatprep.mubr.bf16.mxu0 0
        %959 = vmatmul.mubr.bf16.gmra.mxu0 %v337
        %v960 = vpop.f32.mrf.mxu0
        %v961 = vadd.f32 0.0, %v960
        %v962 = vpop.f32.mrf.mxu0
        %v963 = vpop.f32.mrf.mxu0
        %v964 = vadd.f32 0.0, %v963
        %v965 = vpop.f32.mrf.mxu0
        %966 = vmatprep.mubr.bf16.mxu0 0
        %967 = vmatmul.mubr.bf16.gmra.mxu0 %v340
        %v968 = vpop.f32.mrf.mxu0
        %v969 = vadd.f32 0.0, %v968
        %v970 = vpop.f32.mrf.mxu0
        %v971 = vpop.f32.mrf.mxu0
        %v972 = vadd.f32 0.0, %v971
        %v973 = vpop.f32.mrf.mxu0
        %974 = vdwg.mxu0
        %v975 = vmax.f32 %v917, %v961
        %v976 = vmax.f32 %v918, %v964
        %v977 = vmax.f32 %v919, %v969
        %v978 = vmax.f32 %v920, %v972
        %s979 = scalar_lea.vmem [#allocation2], 44
        %v980 = vld [vmem:[%s979] sm:$0xf]
        %v982 = vsel %vm342, %v980, 0
        %984 = vmatprep.subr.bf16.mxu0 0
        %985 = vmatpush1.bf16.msra.mxu0 0
        %986 = vmatprep.subr.bf16.mxu0 0
        %987 = vmatpush1.bf16.msra.mxu0 0
        %988 = vmatprep.subr.bf16.mxu0 0
        %989 = vmatpush1.bf16.msra.mxu0 0
        %990 = vmatprep.subr.bf16.mxu0 0
        %991 = vmatpush1.bf16.msra.mxu0 0
        %992 = vmatprep.subr.bf16.mxu0 0
        %993 = vmatpush1.bf16.msra.mxu0 0
        %994 = vmatprep.subr.bf16.mxu0 0
        %995 = vmatpush1.bf16.msra.mxu0 0
        %996 = vmatprep.subr.bf16.mxu0 0
        %997 = vmatpush1.bf16.msra.mxu0 0
        %998 = vmatprep.subr.bf16.mxu0 0
        %999 = vmatpush1.bf16.msra.mxu0 %v982
        %1000 = vmatprep.subr.bf16.mxu0 0
        %1001 = vmatpush2.bf16.msra.mxu0 0
        %1002 = vmatprep.subr.bf16.mxu0 0
        %1003 = vmatpush2.bf16.msra.mxu0 0
        %1004 = vmatprep.subr.bf16.mxu0 0
        %1005 = vmatpush2.bf16.msra.mxu0 0
        %1006 = vmatprep.subr.bf16.mxu0 0
        %1007 = vmatpush2.bf16.msra.mxu0 0
        %1008 = vmatprep.subr.bf16.mxu0 0
        %1009 = vmatpush2.bf16.msra.mxu0 0
        %1010 = vmatprep.subr.bf16.mxu0 0
        %1011 = vmatpush2.bf16.msra.mxu0 0
        %1012 = vmatprep.subr.bf16.mxu0 0
        %1013 = vmatpush2.bf16.msra.mxu0 0
        %1014 = vmatprep.subr.bf16.mxu0 0
        %1015 = vmatpush2.bf16.msra.mxu0 0
        %1016 = vmatprep.mubr.bf16.mxu0 0
        %1017 = vmatmul.mubr.bf16.gmra.mxu0 %v337
        %v1018 = vpop.f32.mrf.mxu0
        %v1019 = vadd.f32 0.0, %v1018
        %v1020 = vpop.f32.mrf.mxu0
        %v1021 = vpop.f32.mrf.mxu0
        %v1022 = vadd.f32 0.0, %v1021
        %v1023 = vpop.f32.mrf.mxu0
        %1024 = vmatprep.mubr.bf16.mxu0 0
        %1025 = vmatmul.mubr.bf16.gmra.mxu0 %v340
        %v1026 = vpop.f32.mrf.mxu0
        %v1027 = vadd.f32 0.0, %v1026
        %v1028 = vpop.f32.mrf.mxu0
        %v1029 = vpop.f32.mrf.mxu0
        %v1030 = vadd.f32 0.0, %v1029
        %v1031 = vpop.f32.mrf.mxu0
        %1032 = vdwg.mxu0
        %v1033 = vmax.f32 %v975, %v1019
        %v1034 = vmax.f32 %v976, %v1022
        %v1035 = vmax.f32 %v977, %v1027
        %v1036 = vmax.f32 %v978, %v1030
        %s1037 = scalar_lea.vmem [#allocation2], 48
        %v1038 = vld [vmem:[%s1037] sm:$0xf]
        %v1040 = vsel %vm342, %v1038, 0
        %1042 = vmatprep.subr.bf16.mxu0 0
        %1043 = vmatpush1.bf16.msra.mxu0 0
        %1044 = vmatprep.subr.bf16.mxu0 0
        %1045 = vmatpush1.bf16.msra.mxu0 0
        %1046 = vmatprep.subr.bf16.mxu0 0
        %1047 = vmatpush1.bf16.msra.mxu0 0
        %1048 = vmatprep.subr.bf16.mxu0 0
        %1049 = vmatpush1.bf16.msra.mxu0 0
        %1050 = vmatprep.subr.bf16.mxu0 0
        %1051 = vmatpush1.bf16.msra.mxu0 0
        %1052 = vmatprep.subr.bf16.mxu0 0
        %1053 = vmatpush1.bf16.msra.mxu0 0
        %1054 = vmatprep.subr.bf16.mxu0 0
        %1055 = vmatpush1.bf16.msra.mxu0 0
        %1056 = vmatprep.subr.bf16.mxu0 0
        %1057 = vmatpush1.bf16.msra.mxu0 %v1040
        %1058 = vmatprep.subr.bf16.mxu0 0
        %1059 = vmatpush2.bf16.msra.mxu0 0
        %1060 = vmatprep.subr.bf16.mxu0 0
        %1061 = vmatpush2.bf16.msra.mxu0 0
        %1062 = vmatprep.subr.bf16.mxu0 0
        %1063 = vmatpush2.bf16.msra.mxu0 0
        %1064 = vmatprep.subr.bf16.mxu0 0
        %1065 = vmatpush2.bf16.msra.mxu0 0
        %1066 = vmatprep.subr.bf16.mxu0 0
        %1067 = vmatpush2.bf16.msra.mxu0 0
        %1068 = vmatprep.subr.bf16.mxu0 0
        %1069 = vmatpush2.bf16.msra.mxu0 0
        %1070 = vmatprep.subr.bf16.mxu0 0
        %1071 = vmatpush2.bf16.msra.mxu0 0
        %1072 = vmatprep.subr.bf16.mxu0 0
        %1073 = vmatpush2.bf16.msra.mxu0 0
        %1074 = vmatprep.mubr.bf16.mxu0 0
        %1075 = vmatmul.mubr.bf16.gmra.mxu0 %v337
        %v1076 = vpop.f32.mrf.mxu0
        %v1077 = vadd.f32 0.0, %v1076
        %v1078 = vpop.f32.mrf.mxu0
        %v1079 = vpop.f32.mrf.mxu0
        %v1080 = vadd.f32 0.0, %v1079
        %v1081 = vpop.f32.mrf.mxu0
        %1082 = vmatprep.mubr.bf16.mxu0 0
        %1083 = vmatmul.mubr.bf16.gmra.mxu0 %v340
        %v1084 = vpop.f32.mrf.mxu0
        %v1085 = vadd.f32 0.0, %v1084
        %v1086 = vpop.f32.mrf.mxu0
        %v1087 = vpop.f32.mrf.mxu0
        %v1088 = vadd.f32 0.0, %v1087
        %v1089 = vpop.f32.mrf.mxu0
        %1090 = vdwg.mxu0
        %v1091 = vmax.f32 %v1033, %v1077
        %v1092 = vmax.f32 %v1034, %v1080
        %v1093 = vmax.f32 %v1035, %v1085
        %v1094 = vmax.f32 %v1036, %v1088
        %s1095 = scalar_lea.vmem [#allocation2], 52
        %v1096 = vld [vmem:[%s1095] sm:$0xf]
        %v1098 = vsel %vm342, %v1096, 0
        %1100 = vmatprep.subr.bf16.mxu0 0
        %1101 = vmatpush1.bf16.msra.mxu0 0
        %1102 = vmatprep.subr.bf16.mxu0 0
        %1103 = vmatpush1.bf16.msra.mxu0 0
        %1104 = vmatprep.subr.bf16.mxu0 0
        %1105 = vmatpush1.bf16.msra.mxu0 0
        %1106 = vmatprep.subr.bf16.mxu0 0
        %1107 = vmatpush1.bf16.msra.mxu0 0
        %1108 = vmatprep.subr.bf16.mxu0 0
        %1109 = vmatpush1.bf16.msra.mxu0 0
        %1110 = vmatprep.subr.bf16.mxu0 0
        %1111 = vmatpush1.bf16.msra.mxu0 0
        %1112 = vmatprep.subr.bf16.mxu0 0
        %1113 = vmatpush1.bf16.msra.mxu0 0
        %1114 = vmatprep.subr.bf16.mxu0 0
        %1115 = vmatpush1.bf16.msra.mxu0 %v1098
        %1116 = vmatprep.subr.bf16.mxu0 0
        %1117 = vmatpush2.bf16.msra.mxu0 0
        %1118 = vmatprep.subr.bf16.mxu0 0
        %1119 = vmatpush2.bf16.msra.mxu0 0
        %1120 = vmatprep.subr.bf16.mxu0 0
        %1121 = vmatpush2.bf16.msra.mxu0 0
        %1122 = vmatprep.subr.bf16.mxu0 0
        %1123 = vmatpush2.bf16.msra.mxu0 0
        %1124 = vmatprep.subr.bf16.mxu0 0
        %1125 = vmatpush2.bf16.msra.mxu0 0
        %1126 = vmatprep.subr.bf16.mxu0 0
        %1127 = vmatpush2.bf16.msra.mxu0 0
        %1128 = vmatprep.subr.bf16.mxu0 0
        %1129 = vmatpush2.bf16.msra.mxu0 0
        %1130 = vmatprep.subr.bf16.mxu0 0
        %1131 = vmatpush2.bf16.msra.mxu0 0
        %1132 = vmatprep.mubr.bf16.mxu0 0
        %1133 = vmatmul.mubr.bf16.gmra.mxu0 %v337
        %v1134 = vpop.f32.mrf.mxu0
        %v1135 = vadd.f32 0.0, %v1134
        %v1136 = vpop.f32.mrf.mxu0
        %v1137 = vpop.f32.mrf.mxu0
        %v1138 = vadd.f32 0.0, %v1137
        %v1139 = vpop.f32.mrf.mxu0
        %1140 = vmatprep.mubr.bf16.mxu0 0
        %1141 = vmatmul.mubr.bf16.gmra.mxu0 %v340
        %v1142 = vpop.f32.mrf.mxu0
        %v1143 = vadd.f32 0.0, %v1142
        %v1144 = vpop.f32.mrf.mxu0
        %v1145 = vpop.f32.mrf.mxu0
        %v1146 = vadd.f32 0.0, %v1145
        %v1147 = vpop.f32.mrf.mxu0
        %1148 = vdwg.mxu0
        %v1149 = vmax.f32 %v1091, %v1135
        %v1150 = vmax.f32 %v1092, %v1138
        %v1151 = vmax.f32 %v1093, %v1143
        %v1152 = vmax.f32 %v1094, %v1146
        %s1153 = scalar_lea.vmem [#allocation2], 56
        %v1154 = vld [vmem:[%s1153] sm:$0xf]
        %v1156 = vsel %vm342, %v1154, 0
        %1158 = vmatprep.subr.bf16.mxu0 0
        %1159 = vmatpush1.bf16.msra.mxu0 0
        %1160 = vmatprep.subr.bf16.mxu0 0
        %1161 = vmatpush1.bf16.msra.mxu0 0
        %1162 = vmatprep.subr.bf16.mxu0 0
        %1163 = vmatpush1.bf16.msra.mxu0 0
        %1164 = vmatprep.subr.bf16.mxu0 0
        %1165 = vmatpush1.bf16.msra.mxu0 0
        %1166 = vmatprep.subr.bf16.mxu0 0
        %1167 = vmatpush1.bf16.msra.mxu0 0
        %1168 = vmatprep.subr.bf16.mxu0 0
        %1169 = vmatpush1.bf16.msra.mxu0 0
        %1170 = vmatprep.subr.bf16.mxu0 0
        %1171 = vmatpush1.bf16.msra.mxu0 0
        %1172 = vmatprep.subr.bf16.mxu0 0
        %1173 = vmatpush1.bf16.msra.mxu0 %v1156
        %1174 = vmatprep.subr.bf16.mxu0 0
        %1175 = vmatpush2.bf16.msra.mxu0 0
        %1176 = vmatprep.subr.bf16.mxu0 0
        %1177 = vmatpush2.bf16.msra.mxu0 0
        %1178 = vmatprep.subr.bf16.mxu0 0
        %1179 = vmatpush2.bf16.msra.mxu0 0
        %1180 = vmatprep.subr.bf16.mxu0 0
        %1181 = vmatpush2.bf16.msra.mxu0 0
        %1182 = vmatprep.subr.bf16.mxu0 0
        %1183 = vmatpush2.bf16.msra.mxu0 0
        %1184 = vmatprep.subr.bf16.mxu0 0
        %1185 = vmatpush2.bf16.msra.mxu0 0
        %1186 = vmatprep.subr.bf16.mxu0 0
        %1187 = vmatpush2.bf16.msra.mxu0 0
        %1188 = vmatprep.subr.bf16.mxu0 0
        %1189 = vmatpush2.bf16.msra.mxu0 0
        %1190 = vmatprep.mubr.bf16.mxu0 0
        %1191 = vmatmul.mubr.bf16.gmra.mxu0 %v337
        %v1192 = vpop.f32.mrf.mxu0
        %v1193 = vadd.f32 0.0, %v1192
        %v1194 = vpop.f32.mrf.mxu0
        %v1195 = vpop.f32.mrf.mxu0
        %v1196 = vadd.f32 0.0, %v1195
        %v1197 = vpop.f32.mrf.mxu0
        %1198 = vmatprep.mubr.bf16.mxu0 0
        %1199 = vmatmul.mubr.bf16.gmra.mxu0 %v340
        %v1200 = vpop.f32.mrf.mxu0
        %v1201 = vadd.f32 0.0, %v1200
        %v1202 = vpop.f32.mrf.mxu0
        %v1203 = vpop.f32.mrf.mxu0
        %v1204 = vadd.f32 0.0, %v1203
        %v1205 = vpop.f32.mrf.mxu0
        %1206 = vdwg.mxu0
        %v1207 = vmax.f32 %v1149, %v1193
        %v1208 = vmax.f32 %v1150, %v1196
        %v1209 = vmax.f32 %v1151, %v1201
        %v1210 = vmax.f32 %v1152, %v1204
        %s1211 = scalar_lea.vmem [#allocation2], 60
        %v1212 = vld [vmem:[%s1211] sm:$0xf]
        %v1214 = vsel %vm342, %v1212, 0
        %1216 = vmatprep.subr.bf16.mxu0 0
        %1217 = vmatpush1.bf16.msra.mxu0 0
        %1218 = vmatprep.subr.bf16.mxu0 0
        %1219 = vmatpush1.bf16.msra.mxu0 0
        %1220 = vmatprep.subr.bf16.mxu0 0
        %1221 = vmatpush1.bf16.msra.mxu0 0
        %1222 = vmatprep.subr.bf16.mxu0 0
        %1223 = vmatpush1.bf16.msra.mxu0 0
        %1224 = vmatprep.subr.bf16.mxu0 0
        %1225 = vmatpush1.bf16.msra.mxu0 0
        %1226 = vmatprep.subr.bf16.mxu0 0
        %1227 = vmatpush1.bf16.msra.mxu0 0
        %1228 = vmatprep.subr.bf16.mxu0 0
        %1229 = vmatpush1.bf16.msra.mxu0 0
        %1230 = vmatprep.subr.bf16.mxu0 0
        %1231 = vmatpush1.bf16.msra.mxu0 %v1214
        %1232 = vmatprep.subr.bf16.mxu0 0
        %1233 = vmatpush2.bf16.msra.mxu0 0
        %1234 = vmatprep.subr.bf16.mxu0 0
        %1235 = vmatpush2.bf16.msra.mxu0 0
        %1236 = vmatprep.subr.bf16.mxu0 0
        %1237 = vmatpush2.bf16.msra.mxu0 0
        %1238 = vmatprep.subr.bf16.mxu0 0
        %1239 = vmatpush2.bf16.msra.mxu0 0
        %1240 = vmatprep.subr.bf16.mxu0 0
        %1241 = vmatpush2.bf16.msra.mxu0 0
        %1242 = vmatprep.subr.bf16.mxu0 0
        %1243 = vmatpush2.bf16.msra.mxu0 0
        %1244 = vmatprep.subr.bf16.mxu0 0
        %1245 = vmatpush2.bf16.msra.mxu0 0
        %1246 = vmatprep.subr.bf16.mxu0 0
        %1247 = vmatpush2.bf16.msra.mxu0 0
        %1248 = vmatprep.mubr.bf16.mxu0 0
        %1249 = vmatmul.mubr.bf16.gmra.mxu0 %v337
        %v1250 = vpop.f32.mrf.mxu0
        %v1251 = vadd.f32 0.0, %v1250
        %v1252 = vpop.f32.mrf.mxu0
        %v1253 = vpop.f32.mrf.mxu0
        %v1254 = vadd.f32 0.0, %v1253
        %v1255 = vpop.f32.mrf.mxu0
        %1256 = vmatprep.mubr.bf16.mxu0 0
        %1257 = vmatmul.mubr.bf16.gmra.mxu0 %v340
        %v1258 = vpop.f32.mrf.mxu0
        %v1259 = vadd.f32 0.0, %v1258
        %v1260 = vpop.f32.mrf.mxu0
        %v1261 = vpop.f32.mrf.mxu0
        %v1262 = vadd.f32 0.0, %v1261
        %v1263 = vpop.f32.mrf.mxu0
        %1264 = vdwg.mxu0
        %v1265 = vmax.f32 %v1207, %v1251
        %v1266 = vmax.f32 %v1208, %v1254
        %v1267 = vmax.f32 %v1209, %v1259
        %v1268 = vmax.f32 %v1210, %v1262
        %v1269 = vld [vmem:[%s2] sm:$0xff]
        %v1270 = vld [vmem:[%s2 + $0x8] sm:$0xff]
        %v1271 = vld [vmem:[%s2 + $0x10] sm:$0xff]
        %v1272 = vld [vmem:[%s2 + $0x18] sm:$0xff]
        %1274 = vset.pattern.permute.xlu0 0
        %1275 = vperm.xlu0 %1274, %v1269
        %v1276 = vpop.permute.xlu0 %1275
        %1279 = vset.pattern.permute.xlu0 0
        %1280 = vperm.xlu0 %1279, %v1270
        %v1281 = vpop.permute.xlu0 %1280
        %1284 = vset.pattern.permute.xlu0 0
        %1285 = vperm.xlu0 %1284, %v1271
        %v1286 = vpop.permute.xlu0 %1285
        %1289 = vset.pattern.permute.xlu0 0
        %1290 = vperm.xlu0 %1289, %v1272
        %v1291 = vpop.permute.xlu0 %1290
        %v1293 = vadd.f32 %v1265, %v1276
        %v1294 = vadd.f32 %v1266, %v1281
        %v1295 = vadd.f32 %v1267, %v1286
        %v1296 = vadd.f32 %v1268, %v1291
        %v1297 = vmax.f32 %v1293, 0.0
        %v1298 = vmax.f32 %v1294, 0.0
        %v1299 = vmax.f32 %v1295, 0.0
        %v1300 = vmax.f32 %v1296, 0.0
        %1301 = vst [vmem:[%s160] sm:$0xff] %v1297
        %1302 = vst [vmem:[%s160 + $0x8] sm:$0xff] %v1298
        %1303 = vst [vmem:[%s160 + $0x10] sm:$0xff] %v1299
        %1304 = vst [vmem:[%s160 + $0x18] sm:$0xff] %v1300
        %s1305 = sand.u32 %s90, 1
        %s1306 = sand.u32 %s90, 1
        %s1307 = smul.addr %s1306, 32
        %s1308 = scalar_lea.vmem [#allocation3], %s1307
        // Predicated region
        $region33: #{quant_model_forward.1} parent=31 // pred_check
          %p1309 = pneg %p100
        $region34: #{quant_model_forward.1} parent=31 // pred_check_branch
          %1311 = sbr.rel (%p1309) target = $region36
        $region35: #{quant_model_forward.1} parent=31 // pred_region
          %s1312 = smul.addr %s14, 8
          %s1313 = scalar_lea.vmem %s3, %s1312
          // Predicated region
          $region37: #{quant_model_forward.1} parent=35 // pred_check
            _
          $region38: #{quant_model_forward.1} parent=35 // pred_check_branch
            %1315 = sbr.rel (0) target = $region40
          $region39: #{quant_model_forward.1} parent=35 // pred_region
            // Predicated region
            $region41: #{quant_model_forward.1} parent=39 // pred_check
              _
            $region42: #{quant_model_forward.1} parent=39 // pred_check_branch
              %1317 = sbr.rel (0) target = $region44
            $region43: #{quant_model_forward.1} parent=39 // pred_region
              // Predicated region
              $region56: #{quant_model_forward.1} parent=43 // pred_check
                _
              $region57: #{quant_model_forward.1} parent=43 // pred_check_branch
                %1339 = sbr.rel (0) target = $region59
              $region58: #{quant_model_forward.1} parent=43 // pred_region
                loop: start=0, step=1, limit=1
                $region60: #{quant_model_forward.1} parent=58 // loop_pre_header
                  _
                $region61: #{quant_model_forward.1} parent=58 // loop_header
                  %s1341 = sphi 0, %s1345
                  %p1342 = scmp.ge.s32.totalorder %s1341, 1
                  %s1346 = sphi %s1308, %s1308
                  %s1347 = sphi %s1313, %s1313
                $region62: #{quant_model_forward.1} parent=58 // loop_header_branch
                  %1344 = sbr.rel (%p1342) target = $region66
                $region63: #{quant_model_forward.1} parent=58 // loop_body
                  %v1348 = vld [vmem:[%s1346] sm:$0xff]
                  %1349 = vst [vmem:[%s1347] sm:$0xff] %v1348
                  %v1350 = vld [vmem:[%s1346 + $0x8] sm:$0xff]
                  %1351 = vst [vmem:[%s1347 + $0x20] sm:$0xff] %v1350
                  %v1352 = vld [vmem:[%s1346 + $0x10] sm:$0xff]
                  %1353 = vst [vmem:[%s1347 + $0x40] sm:$0xff] %v1352
                  %v1354 = vld [vmem:[%s1346 + $0x18] sm:$0xff]
                  %1355 = vst [vmem:[%s1347 + $0x60] sm:$0xff] %v1354
                $region64: #{quant_model_forward.1} parent=58 // loop_footer
                  %s1345 = sadd.s32 1, %s1341
                $region65: #{quant_model_forward.1} parent=58 // loop_footer_branch
                  %1340 = sbr.rel target = $region61
                $region66: #{quant_model_forward.1} parent=58 // loop_exit
                  _
              $region59: #{quant_model_forward.1} parent=43 // pred_fallthru
                _
              // Predicated region
              $region67: #{quant_model_forward.1} parent=43 // pred_check
                _
              $region68: #{quant_model_forward.1} parent=43 // pred_check_branch
                %1357 = sbr.rel target = $region70
              $region69: #{quant_model_forward.1} parent=43 // pred_region
                _
              $region70: #{quant_model_forward.1} parent=43 // pred_fallthru
                _
            $region44: #{quant_model_forward.1} parent=39 // pred_fallthru
              _
            // Predicated region
            $region45: #{quant_model_forward.1} parent=39 // pred_check
              _
            $region46: #{quant_model_forward.1} parent=39 // pred_check_branch
              %1319 = sbr.rel target = $region48
            $region47: #{quant_model_forward.1} parent=39 // pred_region
              %s1321 = ssub.s32 256, 1
              loop: start=0, step=1, limit=1
              $region49: #{quant_model_forward.1} parent=47 // loop_pre_header
                _
              $region50: #{quant_model_forward.1} parent=47 // loop_header
                %s1323 = sphi 0, %s1327
                %p1324 = scmp.ge.s32.totalorder %s1323, 1
                %s1328 = sphi %s1308, %s1308
                %s1329 = sphi %s1313, %s1313
              $region51: #{quant_model_forward.1} parent=47 // loop_header_branch
                %1326 = sbr.rel (%p1324) target = $region55
              $region52: #{quant_model_forward.1} parent=47 // loop_body
                %v1330 = vld [vmem:[%s1328] sm:%s1321]
                %1331 = vst [vmem:[%s1329] sm:%s1321] %v1330
                %v1332 = vld [vmem:[%s1328 + $0x8] sm:%s1321]
                %1333 = vst [vmem:[%s1329 + $0x20] sm:%s1321] %v1332
                %v1334 = vld [vmem:[%s1328 + $0x10] sm:%s1321]
                %1335 = vst [vmem:[%s1329 + $0x40] sm:%s1321] %v1334
                %v1336 = vld [vmem:[%s1328 + $0x18] sm:%s1321]
                %1337 = vst [vmem:[%s1329 + $0x60] sm:%s1321] %v1336
              $region53: #{quant_model_forward.1} parent=47 // loop_footer
                %s1327 = sadd.s32 1, %s1323
              $region54: #{quant_model_forward.1} parent=47 // loop_footer_branch
                %1322 = sbr.rel target = $region50
              $region55: #{quant_model_forward.1} parent=47 // loop_exit
                _
            $region48: #{quant_model_forward.1} parent=39 // pred_fallthru
              _
          $region40: #{quant_model_forward.1} parent=35 // pred_fallthru
            _
          %1358 = vnop
        $region36: #{quant_model_forward.1} parent=31 // pred_fallthru
          _
      $region32: #{quant_model_forward.1} parent=5 // pred_fallthru
        _
      %p1359 = scmp.le.s32.totalorder 2, %s9
      // Predicated region
      $region71: #{quant_model_forward.1} parent=5 // pred_check
        %p1360 = pneg %p1359
      $region72: #{quant_model_forward.1} parent=5 // pred_check_branch
        %1362 = sbr.rel (%p1360) target = $region74
      $region73: #{quant_model_forward.1} parent=5 // pred_region
        %s1363 = ssub.s32 %s9, 2
        // Predicated region
        $region75: #{quant_model_forward.1} parent=73 // pred_check
          %p1364 = pneg %p106
        $region76: #{quant_model_forward.1} parent=73 // pred_check_branch
          %1366 = sbr.rel (%p1364) target = $region78
        $region77: #{quant_model_forward.1} parent=73 // pred_region
          %s1367 = sand.u32 %s91, 1
          %s1368 = sand.u32 %s91, 1
          %s1369 = smul.addr %s1368, 32
          %s1370 = scalar_lea.vmem [#allocation3], %s1369
        $region78: #{quant_model_forward.1} parent=73 // pred_fallthru
          _
      $region74: #{quant_model_forward.1} parent=5 // pred_fallthru
        _
    $region6: #{quant_model_forward.1} parent=1 // loop_footer
      %s13 = sadd.s32 1, %s9
    $region7: #{quant_model_forward.1} parent=1 // loop_footer_branch
      %8 = sbr.rel target = $region3
    $region8: #{quant_model_forward.1} parent=1 // loop_exit
      _

</llo_original>
